<compile_context>
chip_gen: v7x
topology: tpu7x:2x2x1
jax: 0.10.0
libtpu: 0.0.40
codegen_flags: <defaults>
</compile_context>

<pallas_src>
import functools

import jax
import jax.numpy as jnp
import numpy as np
from jax import lax
from jax.experimental import pallas as pl
from jax.experimental.pallas import tpu as pltpu

_BN_EPS = 1e-5
_OUT_SUB = 8     # sublanes per partial-sum output block
_OUT_LANE = 128  # lanes per partial-sum output block


def _round_up(x, m):
    return (x + m - 1) // m * m


def _barlow_tile_kernel(z1_ref, z2_ref, out_ref,
                        m_acc, s1_acc, ss1_acc, s2_acc, ss2_acc,
                        *, tile_d, d_true, n_rows, batch_size):
    """Per-(i, j) feature-tile partial sums of the Barlow-Twins loss."""
    ti = pl.program_id(0)
    tj = pl.program_id(1)
    k = pl.program_id(2)
    nk = pl.num_programs(2)
    dn = (((0,), (0,)), ((), ()))  # contract axis 0 of both operands

    @pl.when(k == 0)
    def _init():
        m_acc[...] = jnp.zeros_like(m_acc)
        s1_acc[...] = jnp.zeros_like(s1_acc)
        ss1_acc[...] = jnp.zeros_like(ss1_acc)
        s2_acc[...] = jnp.zeros_like(s2_acc)
        ss2_acc[...] = jnp.zeros_like(ss2_acc)

    z1b = z1_ref[...]            # (tile_k, tile_d), original dtype -> MXU
    z2b = z2_ref[...]
    m_acc[...] += lax.dot_general(z1b, z2b, dn, preferred_element_type=jnp.float32)

    # Per-feature batch statistics, accumulated in f32 (lane-axis vectors).
    z1f = z1b.astype(jnp.float32)
    z2f = z2b.astype(jnp.float32)
    s1_acc[...] += jnp.sum(z1f, axis=0, keepdims=True)
    ss1_acc[...] += jnp.sum(z1f * z1f, axis=0, keepdims=True)
    s2_acc[...] += jnp.sum(z2f, axis=0, keepdims=True)
    ss2_acc[...] += jnp.sum(z2f * z2f, axis=0, keepdims=True)

    @pl.when(k == nk - 1)
    def _finalize():
        inv_n = 1.0 / float(n_rows)
        # TODO(synk): raw-moment variance (E[x^2]-E[x]^2) can lose precision for
        # features whose |mean| >> std; fine for normalized embeddings.
        mu1 = s1_acc[...] * inv_n                                   # (1, tile_d)
        inv1 = lax.rsqrt(ss1_acc[...] * inv_n - mu1 * mu1 + _BN_EPS)
        mu2 = s2_acc[...] * inv_n                                   # (1, tile_d)
        inv2 = lax.rsqrt(ss2_acc[...] * inv_n - mu2 * mu2 + _BN_EPS)

        # Outer products via K=1 dot_general (keeps MXU-friendly layouts,
        # avoids lane->sublane transposes of the stat vectors).
        outer_mu = lax.dot_general(mu1, mu2, dn, preferred_element_type=jnp.float32)
        outer_inv = lax.dot_general(inv1, inv2, dn, preferred_element_type=jnp.float32)

        c = (m_acc[...] - float(n_rows) * outer_mu) * outer_inv * (1.0 / float(batch_size))

        sq_all = jnp.sum(c * c)
        lane = lax.broadcasted_iota(jnp.int32, (_OUT_SUB, _OUT_LANE), 1)

        @pl.when(ti == tj)
        def _diag_tile():
            row = lax.broadcasted_iota(jnp.int32, (tile_d, tile_d), 0)
            col = lax.broadcasted_iota(jnp.int32, (tile_d, tile_d), 1)
            # Global diagonal entries of this tile, excluding D-padding lanes.
            is_diag = (row == col) & (col + tj * tile_d < d_true)
            on_s = jnp.sum(jnp.where(is_diag, (c - 1.0) ** 2, 0.0))
            off_s = sq_all - jnp.sum(jnp.where(is_diag, c * c, 0.0))
            out_ref[...] = jnp.where(lane == 0, on_s,
                                     jnp.where(lane == 1, off_s, 0.0))

        @pl.when(ti != tj)
        def _off_tile():
            # No diagonal entries in this tile: pure square-and-sum.
            out_ref[...] = jnp.where(lane == 1, sq_all, 0.0)


def barlow_twins_loss_headless(z1, z2, *, batch_size=None, lambd=0.005,
                               final_reduction="mean_on_diag",
                               tile_d=None, tile_k=None):
    """JAX/Pallas equivalent of BarlowTwinsLossHeadless.forward (train mode)."""
    if final_reduction not in ("sum", "mean", "mean_on_diag", "mean_off_diag"):
        raise ValueError(
            f"Invalid reduction operation for Barlow Twins: '{final_reduction}'")
    b, d = z1.shape
    assert z2.shape == (b, d)
    if batch_size is None:
        batch_size = b

    # TODO(synk): torch.distributed all_reduce of the cross-correlation matrix
    # (multi-host) is not modeled; single-device semantics only.

    if tile_d is None:
        tile_d = 256 if d >= 256 else 128
    d_pad = _round_up(d, tile_d)
    if tile_k is None:
        tile_k = min(512, _round_up(b, 8))
    else:
        tile_k = _round_up(tile_k, 8)
    b_pad = _round_up(b, tile_k)

    # Zero padding is exact: stats divide by the true batch size, padded rows
    # contribute 0 to all sums, padded feature columns yield c == 0 and the
    # padded diagonal entries are masked in-kernel.
    if (b_pad, d_pad) != (b, d):
        pad = ((0, b_pad - b), (0, d_pad - d))
        z1p = jnp.pad(z1, pad)
        z2p = jnp.pad(z2, pad)
    else:
        z1p, z2p = z1, z2

    n_i = d_pad // tile_d
    n_j = d_pad // tile_d
    n_k = b_pad // tile_k

    kernel = functools.partial(
        _barlow_tile_kernel,
        tile_d=tile_d, d_true=d, n_rows=b, batch_size=batch_size)

    itemsize = jnp.dtype(z1p.dtype).itemsize
    cost = pl.CostEstimate(
        flops=2 * b_pad * d_pad * d_pad,
        transcendentals=2 * d_pad * n_i * n_j,
        bytes_accessed=(n_i + n_j) * b_pad * d_pad * itemsize
                       + n_i * n_j * _OUT_SUB * _OUT_LANE * 4,
    )

    out = pl.pallas_call(
        kernel,
        out_shape=jax.ShapeDtypeStruct((n_i * _OUT_SUB, n_j * _OUT_LANE), jnp.float32),
        grid_spec=pltpu.PrefetchScalarGridSpec(
            num_scalar_prefetch=0,
            grid=(n_i, n_j, n_k),
            in_specs=[
                pl.BlockSpec((tile_k, tile_d), lambda i, j, k: (k, i)),
                pl.BlockSpec((tile_k, tile_d), lambda i, j, k: (k, j)),
            ],
            out_specs=pl.BlockSpec((_OUT_SUB, _OUT_LANE), lambda i, j, k: (i, j)),
            scratch_shapes=[
                pltpu.VMEM((tile_d, tile_d), jnp.float32),   # M accumulator
                pltpu.VMEM((1, tile_d), jnp.float32),        # sum z1
                pltpu.VMEM((1, tile_d), jnp.float32),        # sum z1^2
                pltpu.VMEM((1, tile_d), jnp.float32),        # sum z2
                pltpu.VMEM((1, tile_d), jnp.float32),        # sum z2^2
            ],
        ),
        compiler_params=pltpu.CompilerParams(
            dimension_semantics=("parallel", "parallel", "arbitrary")),
        cost_estimate=cost,
    )(z1p, z2p)

    parts = out.reshape(n_i, _OUT_SUB, n_j, _OUT_LANE)
    on_sum = jnp.sum(parts[:, 0, :, 0])
    off_sum = jnp.sum(parts[:, 0, :, 1])

    n_on = float(d)
    n_off = float(d * d - d)
    if final_reduction == "sum":
        on_r, off_r = on_sum, off_sum
    elif final_reduction == "mean":
        on_r, off_r = on_sum / n_on, off_sum / n_off
    elif final_reduction == "mean_on_diag":
        on_r, off_r = on_sum / n_on, off_sum / n_on
    else:  # mean_off_diag
        on_r, off_r = on_sum / n_off, off_sum / n_off

    return on_r + lambd * off_r


def _reference(z1, z2, batch_size, lambd, final_reduction):
    z1 = z1.astype(jnp.float32)
    z2 = z2.astype(jnp.float32)

    def bn(z):
        mu = jnp.mean(z, axis=0, keepdims=True)
        var = jnp.mean((z - mu) ** 2, axis=0, keepdims=True)
        return (z - mu) / jnp.sqrt(var + _BN_EPS)

    c = bn(z1).T @ bn(z2) / batch_size
    d = c.shape[0]
    diag = jnp.diag(c)
    on = (diag - 1.0) ** 2
    off_mask = ~jnp.eye(d, dtype=bool)
    off = (c ** 2)[off_mask]
    if final_reduction == "sum":
        on_r, off_r = on.sum(), off.sum()
    elif final_reduction == "mean":
        on_r, off_r = on.mean(), off.mean()
    elif final_reduction == "mean_on_diag":
        on_r, off_r = on.mean(), off.sum() / d
    else:  # mean_off_diag
        on_r, off_r = on.sum() / off.size, off.mean()
    return on_r + lambd * off_r


if __name__ == "__main__":
    key = jax.random.PRNGKey(0)
    k1, k2 = jax.random.split(key)
    # D=192 (not a multiple of 128) exercises feature padding + masked diagonal;
    # tile_k=32 forces a multi-step batch-chunk reduction (grid = 2 x 2 x 2).
    B, D = 64, 192
    z1 = jax.random.normal(k1, (B, D), dtype=jnp.float32)
    z2 = jax.random.normal(k2, (B, D), dtype=jnp.float32)

    for red in ("mean_on_diag", "sum"):
        loss = barlow_twins_loss_headless(
            z1, z2, lambd=0.005, final_reduction=red, tile_k=32)
        loss = jax.block_until_ready(loss)
        ref = _reference(z1, z2, B, 0.005, red)
        np.testing.assert_allclose(np.asarray(loss), np.asarray(ref),
                                   rtol=5e-4, atol=5e-4)

    print("KERNEL_OK")
</pallas_src>

<mosaic_0001>
module attributes {stable_mosaic.version = 11 : i64} {
  func.func @_barlow_tile_kernel(%arg0: i32, %arg1: i32, %arg2: i32, %arg3: memref<32x128xf32, #tpu.memory_space<vmem>>, %arg4: memref<32x128xf32, #tpu.memory_space<vmem>>, %arg5: memref<8x128xf32, #tpu.memory_space<vmem>>, %arg6: memref<128x128xf32, #tpu.memory_space<vmem>>, %arg7: memref<1x128xf32, #tpu.memory_space<vmem>>, %arg8: memref<1x128xf32, #tpu.memory_space<vmem>>, %arg9: memref<1x128xf32, #tpu.memory_space<vmem>>, %arg10: memref<1x128xf32, #tpu.memory_space<vmem>>) attributes {dimension_semantics = [#tpu.dimension_semantics<parallel>, #tpu.dimension_semantics<parallel>, #tpu.dimension_semantics<arbitrary>], iteration_bounds = array<i64: 2, 2, 2>, scalar_prefetch = 0 : i64, scratch_operands = 5 : i64, tpu.core_type = #tpu.core_type<tc>, window_params = [{transform_indices = @transform_0, window_bounds = array<i64: 32, 128>}, {transform_indices = @transform_1, window_bounds = array<i64: 32, 128>}, {transform_indices = @transform_2, window_bounds = array<i64: 8, 128>}]} {
    %c0_i32 = arith.constant 0 : i32
    %0 = arith.cmpi eq, %arg2, %c0_i32 : i32
    %1 = arith.extui %0 : i1 to i32
    %c0_i32_0 = arith.constant 0 : i32
    %2 = arith.cmpi ne, %1, %c0_i32_0 : i32
    scf.if %2 {
      %cst_29 = arith.constant 0.000000e+00 : f32
      %34 = vector.broadcast %cst_29 : f32 to vector<128x128xf32>
      %c0_30 = arith.constant 0 : index
      %c0_31 = arith.constant 0 : index
      %35 = vector.load %arg6[%c0_30, %c0_31] : memref<128x128xf32, #tpu.memory_space<vmem>>, vector<128x128xf32>
      tpu.vector_store %arg6[%c0_30, %c0_31], %34 {strides = array<i32>} : memref<128x128xf32, #tpu.memory_space<vmem>>, vector<128x128xf32>,
      %cst_32 = arith.constant 0.000000e+00 : f32
      %36 = vector.broadcast %cst_32 : f32 to vector<1x128xf32>
      %c0_33 = arith.constant 0 : index
      %c0_34 = arith.constant 0 : index
      %37 = vector.load %arg7[%c0_33, %c0_34] : memref<1x128xf32, #tpu.memory_space<vmem>>, vector<1x128xf32>
      tpu.vector_store %arg7[%c0_33, %c0_34], %36 {strides = array<i32>} : memref<1x128xf32, #tpu.memory_space<vmem>>, vector<1x128xf32>,
      %cst_35 = arith.constant 0.000000e+00 : f32
      %38 = vector.broadcast %cst_35 : f32 to vector<1x128xf32>
      %c0_36 = arith.constant 0 : index
      %c0_37 = arith.constant 0 : index
      %39 = vector.load %arg8[%c0_36, %c0_37] : memref<1x128xf32, #tpu.memory_space<vmem>>, vector<1x128xf32>
      tpu.vector_store %arg8[%c0_36, %c0_37], %38 {strides = array<i32>} : memref<1x128xf32, #tpu.memory_space<vmem>>, vector<1x128xf32>,
      %cst_38 = arith.constant 0.000000e+00 : f32
      %40 = vector.broadcast %cst_38 : f32 to vector<1x128xf32>
      %c0_39 = arith.constant 0 : index
      %c0_40 = arith.constant 0 : index
      %41 = vector.load %arg9[%c0_39, %c0_40] : memref<1x128xf32, #tpu.memory_space<vmem>>, vector<1x128xf32>
      tpu.vector_store %arg9[%c0_39, %c0_40], %40 {strides = array<i32>} : memref<1x128xf32, #tpu.memory_space<vmem>>, vector<1x128xf32>,
      %cst_41 = arith.constant 0.000000e+00 : f32
      %42 = vector.broadcast %cst_41 : f32 to vector<1x128xf32>
      %c0_42 = arith.constant 0 : index
      %c0_43 = arith.constant 0 : index
      %43 = vector.load %arg10[%c0_42, %c0_43] : memref<1x128xf32, #tpu.memory_space<vmem>>, vector<1x128xf32>
      tpu.vector_store %arg10[%c0_42, %c0_43], %42 {strides = array<i32>} : memref<1x128xf32, #tpu.memory_space<vmem>>, vector<1x128xf32>,
    } else {
    }
    %c0 = arith.constant 0 : index
    %c0_1 = arith.constant 0 : index
    %3 = vector.load %arg3[%c0, %c0_1] : memref<32x128xf32, #tpu.memory_space<vmem>>, vector<32x128xf32>
    %c0_2 = arith.constant 0 : index
    %c0_3 = arith.constant 0 : index
    %4 = vector.load %arg4[%c0_2, %c0_3] : memref<32x128xf32, #tpu.memory_space<vmem>>, vector<32x128xf32>
    %c0_4 = arith.constant 0 : index
    %c0_5 = arith.constant 0 : index
    %5 = vector.load %arg6[%c0_4, %c0_5] : memref<128x128xf32, #tpu.memory_space<vmem>>, vector<128x128xf32>
    %cst = arith.constant dense<0.000000e+00> : vector<128x128xf32>
    %6 = tpu.matmul %3, %4, %cst {dimension_numbers = #tpu.dot_dimension_numbers<[0], [0], [1], [1], [0, 1, 1, 1], [], []>} : vector<32x128xf32>, vector<32x128xf32>, vector<128x128xf32> -> vector<128x128xf32>
    %7 = arith.addf %5, %6 : vector<128x128xf32>
    %c0_6 = arith.constant 0 : index
    %c0_7 = arith.constant 0 : index
    %8 = vector.load %arg6[%c0_6, %c0_7] : memref<128x128xf32, #tpu.memory_space<vmem>>, vector<128x128xf32>
    tpu.vector_store %arg6[%c0_6, %c0_7], %7 {strides = array<i32>} : memref<128x128xf32, #tpu.memory_space<vmem>>, vector<128x128xf32>,
    %c0_8 = arith.constant 0 : index
    %c0_9 = arith.constant 0 : index
    %9 = vector.load %arg7[%c0_8, %c0_9] : memref<1x128xf32, #tpu.memory_space<vmem>>, vector<1x128xf32>
    %cst_10 = arith.constant dense<0.000000e+00> : vector<128xf32>
    %10 = vector.multi_reduction <add>, %3, %cst_10 [0] : vector<32x128xf32> to vector<128xf32>
    %11 = vector.shape_cast %10 : vector<128xf32> to vector<1x128xf32>
    %12 = arith.addf %9, %11 : vector<1x128xf32>
    %c0_11 = arith.constant 0 : index
    %c0_12 = arith.constant 0 : index
    %13 = vector.load %arg7[%c0_11, %c0_12] : memref<1x128xf32, #tpu.memory_space<vmem>>, vector<1x128xf32>
    tpu.vector_store %arg7[%c0_11, %c0_12], %12 {strides = array<i32>} : memref<1x128xf32, #tpu.memory_space<vmem>>, vector<1x128xf32>,
    %c0_13 = arith.constant 0 : index
    %c0_14 = arith.constant 0 : index
    %14 = vector.load %arg8[%c0_13, %c0_14] : memref<1x128xf32, #tpu.memory_space<vmem>>, vector<1x128xf32>
    %15 = arith.mulf %3, %3 : vector<32x128xf32>
    %cst_15 = arith.constant dense<0.000000e+00> : vector<128xf32>
    %16 = vector.multi_reduction <add>, %15, %cst_15 [0] : vector<32x128xf32> to vector<128xf32>
    %17 = vector.shape_cast %16 : vector<128xf32> to vector<1x128xf32>
    %18 = arith.addf %14, %17 : vector<1x128xf32>
    %c0_16 = arith.constant 0 : index
    %c0_17 = arith.constant 0 : index
    %19 = vector.load %arg8[%c0_16, %c0_17] : memref<1x128xf32, #tpu.memory_space<vmem>>, vector<1x128xf32>
    tpu.vector_store %arg8[%c0_16, %c0_17], %18 {strides = array<i32>} : memref<1x128xf32, #tpu.memory_space<vmem>>, vector<1x128xf32>,
    %c0_18 = arith.constant 0 : index
    %c0_19 = arith.constant 0 : index
    %20 = vector.load %arg9[%c0_18, %c0_19] : memref<1x128xf32, #tpu.memory_space<vmem>>, vector<1x128xf32>
    %cst_20 = arith.constant dense<0.000000e+00> : vector<128xf32>
    %21 = vector.multi_reduction <add>, %4, %cst_20 [0] : vector<32x128xf32> to vector<128xf32>
    %22 = vector.shape_cast %21 : vector<128xf32> to vector<1x128xf32>
    %23 = arith.addf %20, %22 : vector<1x128xf32>
    %c0_21 = arith.constant 0 : index
    %c0_22 = arith.constant 0 : index
    %24 = vector.load %arg9[%c0_21, %c0_22] : memref<1x128xf32, #tpu.memory_space<vmem>>, vector<1x128xf32>
    tpu.vector_store %arg9[%c0_21, %c0_22], %23 {strides = array<i32>} : memref<1x128xf32, #tpu.memory_space<vmem>>, vector<1x128xf32>,
    %c0_23 = arith.constant 0 : index
    %c0_24 = arith.constant 0 : index
    %25 = vector.load %arg10[%c0_23, %c0_24] : memref<1x128xf32, #tpu.memory_space<vmem>>, vector<1x128xf32>
    %26 = arith.mulf %4, %4 : vector<32x128xf32>
    %cst_25 = arith.constant dense<0.000000e+00> : vector<128xf32>
    %27 = vector.multi_reduction <add>, %26, %cst_25 [0] : vector<32x128xf32> to vector<128xf32>
    %28 = vector.shape_cast %27 : vector<128xf32> to vector<1x128xf32>
    %29 = arith.addf %25, %28 : vector<1x128xf32>
    %c0_26 = arith.constant 0 : index
    %c0_27 = arith.constant 0 : index
    %30 = vector.load %arg10[%c0_26, %c0_27] : memref<1x128xf32, #tpu.memory_space<vmem>>, vector<1x128xf32>
    tpu.vector_store %arg10[%c0_26, %c0_27], %29 {strides = array<i32>} : memref<1x128xf32, #tpu.memory_space<vmem>>, vector<1x128xf32>,
    %c1_i32 = arith.constant 1 : i32
    %31 = arith.cmpi eq, %arg2, %c1_i32 : i32
    %32 = arith.extui %31 : i1 to i32
    %c0_i32_28 = arith.constant 0 : i32
    %33 = arith.cmpi ne, %32, %c0_i32_28 : i32
    scf.if %33 {
      %c0_29 = arith.constant 0 : index
      %c0_30 = arith.constant 0 : index
      %34 = vector.load %arg7[%c0_29, %c0_30] : memref<1x128xf32, #tpu.memory_space<vmem>>, vector<1x128xf32>
      %cst_31 = arith.constant 1.562500e-02 : f32
      %35 = vector.broadcast %cst_31 : f32 to vector<1x128xf32>
      %36 = arith.mulf %34, %35 : vector<1x128xf32>
      %c0_32 = arith.constant 0 : index
      %c0_33 = arith.constant 0 : index
      %37 = vector.load %arg8[%c0_32, %c0_33] : memref<1x128xf32, #tpu.memory_space<vmem>>, vector<1x128xf32>
      %cst_34 = arith.constant 1.562500e-02 : f32
      %38 = vector.broadcast %cst_34 : f32 to vector<1x128xf32>
      %39 = arith.mulf %37, %38 : vector<1x128xf32>
      %40 = arith.mulf %36, %36 : vector<1x128xf32>
      %41 = arith.subf %39, %40 : vector<1x128xf32>
      %cst_35 = arith.constant 9.99999974E-6 : f32
      %42 = vector.broadcast %cst_35 : f32 to vector<1x128xf32>
      %43 = arith.addf %41, %42 : vector<1x128xf32>
      %44 = math.rsqrt %43 : vector<1x128xf32>
      %c0_36 = arith.constant 0 : index
      %c0_37 = arith.constant 0 : index
      %45 = vector.load %arg9[%c0_36, %c0_37] : memref<1x128xf32, #tpu.memory_space<vmem>>, vector<1x128xf32>
      %cst_38 = arith.constant 1.562500e-02 : f32
      %46 = vector.broadcast %cst_38 : f32 to vector<1x128xf32>
      %47 = arith.mulf %45, %46 : vector<1x128xf32>
      %c0_39 = arith.constant 0 : index
      %c0_40 = arith.constant 0 : index
      %48 = vector.load %arg10[%c0_39, %c0_40] : memref<1x128xf32, #tpu.memory_space<vmem>>, vector<1x128xf32>
      %cst_41 = arith.constant 1.562500e-02 : f32
      %49 = vector.broadcast %cst_41 : f32 to vector<1x128xf32>
      %50 = arith.mulf %48, %49 : vector<1x128xf32>
      %51 = arith.mulf %47, %47 : vector<1x128xf32>
      %52 = arith.subf %50, %51 : vector<1x128xf32>
      %cst_42 = arith.constant 9.99999974E-6 : f32
      %53 = vector.broadcast %cst_42 : f32 to vector<1x128xf32>
      %54 = arith.addf %52, %53 : vector<1x128xf32>
      %55 = math.rsqrt %54 : vector<1x128xf32>
      %cst_43 = arith.constant dense<0.000000e+00> : vector<128x128xf32>
      %56 = tpu.matmul %36, %47, %cst_43 {dimension_numbers = #tpu.dot_dimension_numbers<[0], [0], [1], [1], [0, 1, 1, 1], [], []>} : vector<1x128xf32>, vector<1x128xf32>, vector<128x128xf32> -> vector<128x128xf32>
      %cst_44 = arith.constant dense<0.000000e+00> : vector<128x128xf32>
      %57 = tpu.matmul %44, %55, %cst_44 {dimension_numbers = #tpu.dot_dimension_numbers<[0], [0], [1], [1], [0, 1, 1, 1], [], []>} : vector<1x128xf32>, vector<1x128xf32>, vector<128x128xf32> -> vector<128x128xf32>
      %c0_45 = arith.constant 0 : index
      %c0_46 = arith.constant 0 : index
      %58 = vector.load %arg6[%c0_45, %c0_46] : memref<128x128xf32, #tpu.memory_space<vmem>>, vector<128x128xf32>
      %cst_47 = arith.constant 6.400000e+01 : f32
      %59 = vector.broadcast %cst_47 : f32 to vector<128x128xf32>
      %60 = arith.mulf %59, %56 : vector<128x128xf32>
      %61 = arith.subf %58, %60 : vector<128x128xf32>
      %62 = arith.mulf %61, %57 : vector<128x128xf32>
      %cst_48 = arith.constant 1.562500e-02 : f32
      %63 = vector.broadcast %cst_48 : f32 to vector<128x128xf32>
      %64 = arith.mulf %62, %63 : vector<128x128xf32>
      %65 = arith.mulf %64, %64 : vector<128x128xf32>
      %66 = vector.shape_cast %65 : vector<128x128xf32> to vector<1x128x128xf32>
      %cst_49 = arith.constant dense<0.000000e+00> : vector<1xf32>
      %67 = vector.multi_reduction <add>, %66, %cst_49 [1, 2] : vector<1x128x128xf32> to vector<1xf32>
      %68 = vector.shape_cast %67 : vector<1xf32> to vector<1x1x1xf32>
      %69 = vector.extract %68[0, 0, 0] : f32 from vector<1x1x1xf32>
      %70 = tpu.iota {dimensions = array<i32: 1>} : vector<8x128xi32>
      %71 = arith.cmpi eq, %arg0, %arg1 : i32
      %72 = arith.extui %71 : i1 to i32
      %c0_i32_50 = arith.constant 0 : i32
      %73 = arith.cmpi ne, %72, %c0_i32_50 : i32
      scf.if %73 {
        %77 = tpu.iota {dimensions = array<i32: 0>} : vector<128x128xi32>
        %78 = tpu.iota {dimensions = array<i32: 1>} : vector<128x128xi32>
        %79 = arith.cmpi eq, %77, %78 : vector<128x128xi32>
        %c128_i32 = arith.constant 128 : i32
        %80 = arith.muli %arg1, %c128_i32 : i32
        %81 = vector.broadcast %80 : i32 to vector<128x128xi32>
        %82 = arith.addi %78, %81 : vector<128x128xi32>
        %c192_i32 = arith.constant 192 : i32
        %83 = vector.broadcast %c192_i32 : i32 to vector<128x128xi32>
        %84 = arith.cmpi slt, %82, %83 : vector<128x128xi32>
        %85 = arith.andi %79, %84 : vector<128x128xi1>
        %cst_52 = arith.constant 1.000000e+00 : f32
        %86 = vector.broadcast %cst_52 : f32 to vector<128x128xf32>
        %87 = arith.subf %64, %86 : vector<128x128xf32>
        %88 = arith.mulf %87, %87 : vector<128x128xf32>
        %cst_53 = arith.constant 0.000000e+00 : f32
        %89 = vector.broadcast %cst_53 : f32 to vector<128x128xf32>
        %90 = arith.select %85, %88, %89 : vector<128x128xi1>, vector<128x128xf32>
        %91 = vector.shape_cast %90 : vector<128x128xf32> to vector<1x128x128xf32>
        %cst_54 = arith.constant dense<0.000000e+00> : vector<1xf32>
        %92 = vector.multi_reduction <add>, %91, %cst_54 [1, 2] : vector<1x128x128xf32> to vector<1xf32>
        %93 = vector.shape_cast %92 : vector<1xf32> to vector<1x1x1xf32>
        %94 = vector.extract %93[0, 0, 0] : f32 from vector<1x1x1xf32>
        %95 = arith.mulf %64, %64 : vector<128x128xf32>
        %cst_55 = arith.constant 0.000000e+00 : f32
        %96 = vector.broadcast %cst_55 : f32 to vector<128x128xf32>
        %97 = arith.select %85, %95, %96 : vector<128x128xi1>, vector<128x128xf32>
        %98 = vector.shape_cast %97 : vector<128x128xf32> to vector<1x128x128xf32>
        %cst_56 = arith.constant dense<0.000000e+00> : vector<1xf32>
        %99 = vector.multi_reduction <add>, %98, %cst_56 [1, 2] : vector<1x128x128xf32> to vector<1xf32>
        %100 = vector.shape_cast %99 : vector<1xf32> to vector<1x1x1xf32>
        %101 = vector.extract %100[0, 0, 0] : f32 from vector<1x1x1xf32>
        %102 = arith.subf %69, %101 : f32
        %c0_i32_57 = arith.constant 0 : i32
        %103 = vector.broadcast %c0_i32_57 : i32 to vector<8x128xi32>
        %104 = arith.cmpi eq, %70, %103 : vector<8x128xi32>
        %c1_i32_58 = arith.constant 1 : i32
        %105 = vector.broadcast %c1_i32_58 : i32 to vector<8x128xi32>
        %106 = arith.cmpi eq, %70, %105 : vector<8x128xi32>
        %cst_59 = arith.constant 0.000000e+00 : f32
        %107 = vector.broadcast %102 : f32 to vector<8x128xf32>
        %108 = vector.broadcast %cst_59 : f32 to vector<8x128xf32>
        %109 = arith.select %106, %107, %108 : vector<8x128xi1>, vector<8x128xf32>
        %110 = vector.broadcast %94 : f32 to vector<8x128xf32>
        %111 = arith.select %104, %110, %109 : vector<8x128xi1>, vector<8x128xf32>
        %c0_60 = arith.constant 0 : index
        %c0_61 = arith.constant 0 : index
        %112 = vector.load %arg5[%c0_60, %c0_61] : memref<8x128xf32, #tpu.memory_space<vmem>>, vector<8x128xf32>
        tpu.vector_store %arg5[%c0_60, %c0_61], %111 {strides = array<i32>} : memref<8x128xf32, #tpu.memory_space<vmem>>, vector<8x128xf32>,
      } else {
      }
      %74 = arith.cmpi ne, %arg0, %arg1 : i32
      %75 = arith.extui %74 : i1 to i32
      %c0_i32_51 = arith.constant 0 : i32
      %76 = arith.cmpi ne, %75, %c0_i32_51 : i32
      scf.if %76 {
        %c1_i32_52 = arith.constant 1 : i32
        %77 = vector.broadcast %c1_i32_52 : i32 to vector<8x128xi32>
        %78 = arith.cmpi eq, %70, %77 : vector<8x128xi32>
        %cst_53 = arith.constant 0.000000e+00 : f32
        %79 = vector.broadcast %69 : f32 to vector<8x128xf32>
        %80 = vector.broadcast %cst_53 : f32 to vector<8x128xf32>
        %81 = arith.select %78, %79, %80 : vector<8x128xi1>, vector<8x128xf32>
        %c0_54 = arith.constant 0 : index
        %c0_55 = arith.constant 0 : index
        %82 = vector.load %arg5[%c0_54, %c0_55] : memref<8x128xf32, #tpu.memory_space<vmem>>, vector<8x128xf32>
        tpu.vector_store %arg5[%c0_54, %c0_55], %81 {strides = array<i32>} : memref<8x128xf32, #tpu.memory_space<vmem>>, vector<8x128xf32>,
      } else {
      }
    } else {
    }
    return
  }
  func.func @transform_0(%arg0: i32, %arg1: i32, %arg2: i32) -> (i32, i32) {
    %c0_i32 = arith.constant 0 : i32
    return %arg2, %arg0 : i32, i32
  }
  func.func @transform_1(%arg0: i32, %arg1: i32, %arg2: i32) -> (i32, i32) {
    %c0_i32 = arith.constant 0 : i32
    return %arg2, %arg1 : i32, i32
  }
  func.func @transform_2(%arg0: i32, %arg1: i32, %arg2: i32) -> (i32, i32) {
    %c0_i32 = arith.constant 0 : i32
    return %arg0, %arg1 : i32, i32
  }
}

</mosaic_0001>

<llo_original>
// kernel: tpu_custom_call.1
$region0: #{tpu_custom_call.1}
  #allocation0 [shape = 'u32[]', space=smem, size = 0x4, offset = 0x4, fixed_abs, tag = 'smem constant byte address 0x4 - core index']
  #allocation1 [shape = 'u32[144,128]{1,0:T(1,128)}', space=vmem, size = 0x12000, scoped, tag = 'internal scratch']
  #allocation2 [shape = 'f32[128,128]{1,0:T(8,128)}', space=vmem, size = 0x10000, scoped, tag = 'scratch operand']
  #allocation3 [shape = 'f32[1,128]{1,0:T(1,128)}', space=vmem, size = 0x200, scoped, tag = 'scratch operand']
  #allocation4 [shape = 'f32[1,128]{1,0:T(1,128)}', space=vmem, size = 0x200, scoped, tag = 'scratch operand']
  #allocation5 [shape = 'f32[1,128]{1,0:T(1,128)}', space=vmem, size = 0x200, scoped, tag = 'scratch operand']
  #allocation6 [shape = 'f32[1,128]{1,0:T(1,128)}', space=vmem, size = 0x200, scoped, tag = 'scratch operand']
  %s0 = inlined_call_operand.hbm [shape: f32[64,256], index: 0, kind: input, shape index: {}]
  %s1 = inlined_call_operand.hbm [shape: f32[64,256], index: 1, kind: input, shape index: {}]
  %s2 = inlined_call_operand.hbm [shape: f32[16,256], index: 2, kind: output, shape index: {}]
  %s3 = sld [smem:[#allocation0]]
  $region65: #{tpu_custom_call.1} parent=0
    _
  %s5 = ssub.s32 1, %s3
  %s6 = scalar_select 0, %s5, %s3
  $region1: #{tpu_custom_call.1} parent=0
    #allocation7 [shape = 'u8[32768]{0}', space=vmem, size = 0x8000, scoped, tag = 'input window, operand 0']
    #allocation8 [shape = 's32[2]{0}', space=sflag, size = 0x8, scoped, tag = 'scoped memory for tpu_custom_call.1']
    #allocation9 [shape = 's32[2]{0}', space=sflag, size = 0x8, scoped, tag = 'scoped memory for tpu_custom_call.1']
    #allocation10 [shape = 'u8[32768]{0}', space=vmem, size = 0x8000, scoped, tag = 'input window, operand 1']
    #allocation11 [shape = 's32[2]{0}', space=sflag, size = 0x8, scoped, tag = 'scoped memory for tpu_custom_call.1']
    #allocation12 [shape = 'u8[8192]{0}', space=vmem, size = 0x2000, scoped, tag = 'output window, operand 0']
    %7 = vsyncpa [#allocation8], 0
    %s8 = scalar_lea.sflag [#allocation8], 1
    %9 = vsyncpa %s8, 0
    %10 = vsyncpa [#allocation11], 0
    %s11 = scalar_lea.sflag [#allocation11], 1
    %12 = vsyncpa %s11, 0
    %13 = vsyncpa [#allocation9], 0
    %s14 = scalar_lea.sflag [#allocation9], 1
    %15 = vsyncpa %s14, 0
    loop: start=0, step=1, limit=10
    $region2: #{tpu_custom_call.1} parent=1 // loop_pre_header
      _
    $region3: #{tpu_custom_call.1} parent=1 // loop_header
      %s17 = sphi 0, %s21
      %p18 = scmp.ge.s32.totalorder %s17, 10
      %s24 = sphi 0, %s43
      %s25 = sphi 0, %s39
      %s26 = sphi 0, %s35
      %s27 = sphi 0, %s24
      %s28 = sphi 0, %s25
      %s29 = sphi 0, %s26
      %s30 = sphi 0, %s27
      %s31 = sphi 0, %s28
      %s32 = sphi 0, %s29
      %s48 = sphi 0, %s50
      %s51 = sphi 0, %s48
      %s52 = sphi 0, %s51
      %s68 = sphi 0, %s52
      %s76 = sphi 0, %s78
      %s79 = sphi 0, %s76
      %s80 = sphi 0, %s79
      %s96 = sphi 0, %s80
      %s104 = sphi 0, %s106
      %s107 = sphi 0, %s104
      %s108 = sphi 0, %s107
      %s124 = sphi 0, %s108
    $region4: #{tpu_custom_call.1} parent=1 // loop_header_branch
      %20 = sbr.rel (%p18) target = $region8
    $region5: #{tpu_custom_call.1} parent=1 // loop_body
      %s22 = ssub.s32 %s17, 1
      %s23 = ssub.s32 %s17, 2
      %s33 = sadd.s32 1, %s26
      %p34 = scmp.ge.s32.totalorder %s33, 2
      %s35 = scalar_select %p34, 0, %s33
      %s36 = sadd.s32 1, %s25
      %s37 = scalar_select %p34, %s36, %s25
      %p38 = scmp.ge.s32.totalorder %s37, 2
      %s39 = scalar_select %p38, 0, %s37
      %s40 = sadd.s32 1, %s24
      %s41 = scalar_select %p38, %s40, %s24
      %p42 = scmp.ge.s32.totalorder %s41, 2
      %s43 = scalar_select %p42, 0, %s41
      %s44 = ssub.s32 %s26, %s35
      %s45 = ssub.s32 %s24, %s43
      %s46 = sor.u32 %s44, %s45
      %p47 = scmp.eq.s32.totalorder %s46, 0
      %s49 = sadd.s32 %s48, 1
      %s50 = scalar_select %p47, %s48, %s49
      %p53 = pneg %p47
      %p54 = scmp.eq.s32.totalorder %s17, 7
      %p55 = por %p53, %p54
      %p56 = scmp.ne.s32.totalorder %s48, %s51
      %p57 = scmp.eq.s32.totalorder %s17, 0
      %p58 = por %p56, %p57
      %p59 = scmp.ne.s32.totalorder %s48, %s51
      %p60 = scmp.eq.s32.totalorder %s22, 7
      %p61 = por %p59, %p60
      %p62 = scmp.ne.s32.totalorder %s51, %s52
      %p63 = scmp.eq.s32.totalorder %s22, 0
      %p64 = por %p62, %p63
      %p65 = scmp.ne.s32.totalorder %s51, %s52
      %p66 = scmp.eq.s32.totalorder %s23, 7
      %p67 = por %p65, %p66
      %p69 = scmp.ne.s32.totalorder %s52, %s68
      %p70 = scmp.eq.s32.totalorder %s23, 0
      %p71 = por %p69, %p70
      %s72 = ssub.s32 %s26, %s35
      %s73 = ssub.s32 %s25, %s39
      %s74 = sor.u32 %s72, %s73
      %p75 = scmp.eq.s32.totalorder %s74, 0
      %s77 = sadd.s32 %s76, 1
      %s78 = scalar_select %p75, %s76, %s77
      %p81 = pneg %p75
      %p82 = scmp.eq.s32.totalorder %s17, 7
      %p83 = por %p81, %p82
      %p84 = scmp.ne.s32.totalorder %s76, %s79
      %p85 = scmp.eq.s32.totalorder %s17, 0
      %p86 = por %p84, %p85
      %p87 = scmp.ne.s32.totalorder %s76, %s79
      %p88 = scmp.eq.s32.totalorder %s22, 7
      %p89 = por %p87, %p88
      %p90 = scmp.ne.s32.totalorder %s79, %s80
      %p91 = scmp.eq.s32.totalorder %s22, 0
      %p92 = por %p90, %p91
      %p93 = scmp.ne.s32.totalorder %s79, %s80
      %p94 = scmp.eq.s32.totalorder %s23, 7
      %p95 = por %p93, %p94
      %p97 = scmp.ne.s32.totalorder %s80, %s96
      %p98 = scmp.eq.s32.totalorder %s23, 0
      %p99 = por %p97, %p98
      %s100 = ssub.s32 %s24, %s43
      %s101 = ssub.s32 %s25, %s39
      %s102 = sor.u32 %s100, %s101
      %p103 = scmp.eq.s32.totalorder %s102, 0
      %s105 = sadd.s32 %s104, 1
      %s106 = scalar_select %p103, %s104, %s105
      %p109 = pneg %p103
      %p110 = scmp.eq.s32.totalorder %s17, 7
      %p111 = por %p109, %p110
      %p112 = scmp.ne.s32.totalorder %s104, %s107
      %p113 = scmp.eq.s32.totalorder %s17, 0
      %p114 = por %p112, %p113
      %p115 = scmp.ne.s32.totalorder %s104, %s107
      %p116 = scmp.eq.s32.totalorder %s22, 7
      %p117 = por %p115, %p116
      %p118 = scmp.ne.s32.totalorder %s107, %s108
      %p119 = scmp.eq.s32.totalorder %s22, 0
      %p120 = por %p118, %p119
      %p121 = scmp.ne.s32.totalorder %s107, %s108
      %p122 = scmp.eq.s32.totalorder %s23, 7
      %p123 = por %p121, %p122
      %p125 = scmp.ne.s32.totalorder %s108, %s124
      %p126 = scmp.eq.s32.totalorder %s23, 0
      %p127 = por %p125, %p126
      %p128 = scmp.le.s32.totalorder 1, %s17
      %p129 = scmp.lt.s32.totalorder %s17, 9
      %p130 = pnand %p128, %p129
      %p131 = pneg %p130
      // Predicated region
      $region9: #{tpu_custom_call.1} parent=5 // pred_check
        _
      $region10: #{tpu_custom_call.1} parent=5 // pred_check_branch
        %133 = sbr.rel (%p130) target = $region12
      $region11: #{tpu_custom_call.1} parent=5 // pred_region
        %s134 = ssub.s32 %s17, 1
      $region12: #{tpu_custom_call.1} parent=5 // pred_fallthru
        _
      %p135 = scmp.lt.s32.totalorder %s17, 8
      // Predicated region
      $region13: #{tpu_custom_call.1} parent=5 // pred_check
        %p136 = pneg %p135
      $region14: #{tpu_custom_call.1} parent=5 // pred_check_branch
        %138 = sbr.rel (%p136) target = $region16
      $region15: #{tpu_custom_call.1} parent=5 // pred_region
        // Predicated region
        $region17: #{tpu_custom_call.1} parent=15 // pred_check
          %p139 = pneg %p58
        $region18: #{tpu_custom_call.1} parent=15 // pred_check_branch
          %141 = sbr.rel (%p139) target = $region20
        $region19: #{tpu_custom_call.1} parent=15 // pred_region
          %s142 = sand.u32 %s48, 1
          %s143 = scalar_lea.sflag [#allocation8], %s142
          %s144 = sand.u32 %s48, 1
          %s145 = smul.addr %s144, 32
          %s146 = scalar_lea.vmem [#allocation7], %s145
          %s147 = smul.u32 4, %s26
          %s149 = ssub.s32 512, 512
          %150 = vsyncadd %s143, %s149
          %s151 = smul.addr %s147, 2
          %s152 = sadd.s32 %s24, %s151
          %s153 = smul.addr %s152, 128
          %s154 = scalar_lea.hbm %s0, %s153
          %s155 = sshll.u32 %s146, 4
          %s156 = int_to_ptr.vmem [resolvable:$true] %s155
          %161 = dma.hbm_to_vmem [thread:$0]  %s154, 512, %s156, %s143, 256, 128, 8
        $region20: #{tpu_custom_call.1} parent=15 // pred_fallthru
          _
        // Predicated region
        $region21: #{tpu_custom_call.1} parent=15 // pred_check
          %p162 = pneg %p86
        $region22: #{tpu_custom_call.1} parent=15 // pred_check_branch
          %164 = sbr.rel (%p162) target = $region24
        $region23: #{tpu_custom_call.1} parent=15 // pred_region
          %s165 = sand.u32 %s76, 1
          %s166 = scalar_lea.sflag [#allocation11], %s165
          %s167 = sand.u32 %s76, 1
          %s168 = smul.addr %s167, 32
          %s169 = scalar_lea.vmem [#allocation10], %s168
          %s170 = smul.u32 4, %s26
          %s172 = ssub.s32 512, 512
          %173 = vsyncadd %s166, %s172
          %s174 = smul.addr %s170, 2
          %s175 = sadd.s32 %s25, %s174
          %s176 = smul.addr %s175, 128
          %s177 = scalar_lea.hbm %s1, %s176
          %s178 = sshll.u32 %s169, 4
          %s179 = int_to_ptr.vmem [resolvable:$true] %s178
          %184 = dma.hbm_to_vmem [thread:$0]  %s177, 512, %s179, %s166, 256, 128, 8
        $region24: #{tpu_custom_call.1} parent=15 // pred_fallthru
          _
      $region16: #{tpu_custom_call.1} parent=5 // pred_fallthru
        _
      %p185 = scmp.le.s32.totalorder 1, %s17
      %p186 = scmp.lt.s32.totalorder %s17, 9
      %p187 = pnand %p185, %p186
      %p188 = pneg %p187
      // Predicated region
      $region25: #{tpu_custom_call.1} parent=5 // pred_check
        _
      $region26: #{tpu_custom_call.1} parent=5 // pred_check_branch
        %190 = sbr.rel (%p187) target = $region28
      $region27: #{tpu_custom_call.1} parent=5 // pred_region
        %s191 = ssub.s32 %s17, 1
        %s192 = sand.u32 %s51, 1
        %s193 = scalar_lea.sflag [#allocation8], %s192
        %s194 = sand.u32 %s51, 1
        %s195 = smul.addr %s194, 32
        %s196 = scalar_lea.vmem [#allocation7], %s195
        // Predicated region
        $region29: #{tpu_custom_call.1} parent=27 // pred_check
          %p197 = pneg %p64
        $region30: #{tpu_custom_call.1} parent=27 // pred_check_branch
          %199 = sbr.rel (%p197) target = $region32
        $region31: #{tpu_custom_call.1} parent=27 // pred_region
          %200 = dma.done %s193, 512
        $region32: #{tpu_custom_call.1} parent=27 // pred_fallthru
          _
        %s201 = sand.u32 %s79, 1
        %s202 = scalar_lea.sflag [#allocation11], %s201
        %s203 = sand.u32 %s79, 1
        %s204 = smul.addr %s203, 32
        %s205 = scalar_lea.vmem [#allocation10], %s204
        // Predicated region
        $region33: #{tpu_custom_call.1} parent=27 // pred_check
          %p206 = pneg %p92
        $region34: #{tpu_custom_call.1} parent=27 // pred_check_branch
          %208 = sbr.rel (%p206) target = $region36
        $region35: #{tpu_custom_call.1} parent=27 // pred_region
          %209 = dma.done %s202, 512
        $region36: #{tpu_custom_call.1} parent=27 // pred_fallthru
          _
        %s210 = sand.u32 %s51, 1
        %s211 = scalar_lea.sflag [#allocation8], %s210
        %s212 = sand.u32 %s51, 1
        %s213 = smul.addr %s212, 32
        %s214 = scalar_lea.vmem [#allocation7], %s213
        %p215 = pneg %p64
        %p216 = pneg %p61
        %s217 = sand.u32 %s79, 1
        %s218 = scalar_lea.sflag [#allocation11], %s217
        %s219 = sand.u32 %s79, 1
        %s220 = smul.addr %s219, 32
        %s221 = scalar_lea.vmem [#allocation10], %s220
        %p222 = pneg %p92
        %p223 = pneg %p89
        %p224 = pneg %p120
        %p225 = pneg %p117
        %s226 = sand.u32 %s107, 1
        %s227 = scalar_lea.sflag [#allocation9], %s226
        %s228 = sand.u32 %s107, 1
        %s229 = smul.addr %s228, 8
        %s230 = scalar_lea.vmem [#allocation12], %s229
        %s231 = smul.u32 4, %s29
        %s232 = smul.u32 4, %s29
        %p233 = scmp.eq.s32.totalorder %s29, 0
        // Predicated region
        $region37: #{tpu_custom_call.1} parent=27 // pred_check
          %p234 = pneg %p233
        $region38: #{tpu_custom_call.1} parent=27 // pred_check_branch
          %236 = sbr.rel (%p234) target = $region40
        $region39: #{tpu_custom_call.1} parent=27 // pred_region
          %237 = vst [vmem:[#allocation2] sm:$0xff] 0.0
          %238 = vst [vmem:[#allocation2 + $0x8] sm:$0xff] 0.0
          %239 = vst [vmem:[#allocation2 + $0x10] sm:$0xff] 0.0
          %240 = vst [vmem:[#allocation2 + $0x18] sm:$0xff] 0.0
          %241 = vst [vmem:[#allocation2 + $0x20] sm:$0xff] 0.0
          %242 = vst [vmem:[#allocation2 + $0x28] sm:$0xff] 0.0
          %243 = vst [vmem:[#allocation2 + $0x30] sm:$0xff] 0.0
          %244 = vst [vmem:[#allocation2 + $0x38] sm:$0xff] 0.0
          %245 = vst [vmem:[#allocation2 + $0x40] sm:$0xff] 0.0
          %246 = vst [vmem:[#allocation2 + $0x48] sm:$0xff] 0.0
          %247 = vst [vmem:[#allocation2 + $0x50] sm:$0xff] 0.0
          %248 = vst [vmem:[#allocation2 + $0x58] sm:$0xff] 0.0
          %249 = vst [vmem:[#allocation2 + $0x60] sm:$0xff] 0.0
          %250 = vst [vmem:[#allocation2 + $0x68] sm:$0xff] 0.0
          %251 = vst [vmem:[#allocation2 + $0x70] sm:$0xff] 0.0
          %252 = vst [vmem:[#allocation2 + $0x78] sm:$0xff] 0.0
          %253 = vst [vmem:[#allocation3] sm:$0x1] 0.0
          %254 = vst [vmem:[#allocation4] sm:$0x1] 0.0
          %255 = vst [vmem:[#allocation5] sm:$0x1] 0.0
          %256 = vst [vmem:[#allocation6] sm:$0x1] 0.0
        $region40: #{tpu_custom_call.1} parent=27 // pred_fallthru
          _
        %v257 = vld [vmem:[%s196] sm:$0xff]
        %v258 = vld [vmem:[%s196 + $0x8] sm:$0xff]
        %v259 = vld [vmem:[%s196 + $0x10] sm:$0xff]
        %v260 = vld [vmem:[%s196 + $0x18] sm:$0xff]
        %v261 = vld [vmem:[%s205] sm:$0xff]
        %v262 = vld [vmem:[%s205 + $0x8] sm:$0xff]
        %v263 = vld [vmem:[%s205 + $0x10] sm:$0xff]
        %v264 = vld [vmem:[%s205 + $0x18] sm:$0xff]
        %v265 = vld [vmem:[#allocation2] sm:$0xff]
        %v266 = vld [vmem:[#allocation2 + $0x8] sm:$0xff]
        %v267 = vld [vmem:[#allocation2 + $0x10] sm:$0xff]
        %v268 = vld [vmem:[#allocation2 + $0x18] sm:$0xff]
        %v269 = vld [vmem:[#allocation2 + $0x20] sm:$0xff]
        %v270 = vld [vmem:[#allocation2 + $0x28] sm:$0xff]
        %v271 = vld [vmem:[#allocation2 + $0x30] sm:$0xff]
        %v272 = vld [vmem:[#allocation2 + $0x38] sm:$0xff]
        %v273 = vld [vmem:[#allocation2 + $0x40] sm:$0xff]
        %v274 = vld [vmem:[#allocation2 + $0x48] sm:$0xff]
        %v275 = vld [vmem:[#allocation2 + $0x50] sm:$0xff]
        %v276 = vld [vmem:[#allocation2 + $0x58] sm:$0xff]
        %v277 = vld [vmem:[#allocation2 + $0x60] sm:$0xff]
        %v278 = vld [vmem:[#allocation2 + $0x68] sm:$0xff]
        %v279 = vld [vmem:[#allocation2 + $0x70] sm:$0xff]
        %v280 = vld [vmem:[#allocation2 + $0x78] sm:$0xff]
        %281 = vxpose.xlu0.b32.start [1/16] %v257, 128
        %282 = vxpose.xlu0.b32.cont [2/16] %v258, 128
        %283 = vxpose.xlu0.b32.cont [3/16] %v259, 128
        %284 = vxpose.xlu0.b32.cont [4/16] %v260, 128
        %285 = vxpose.xlu0.b32.cont [5/16] 0.0, 128
        %286 = vxpose.xlu0.b32.cont [6/16] 0.0, 128
        %287 = vxpose.xlu0.b32.cont [7/16] 0.0, 128
        %288 = vxpose.xlu0.b32.cont [8/16] 0.0, 128
        %289 = vxpose.xlu0.b32.cont [9/16] 0.0, 128
        %290 = vxpose.xlu0.b32.cont [10/16] 0.0, 128
        %291 = vxpose.xlu0.b32.cont [11/16] 0.0, 128
        %292 = vxpose.xlu0.b32.cont [12/16] 0.0, 128
        %293 = vxpose.xlu0.b32.cont [13/16] 0.0, 128
        %294 = vxpose.xlu0.b32.cont [14/16] 0.0, 128
        %295 = vxpose.xlu0.b32.cont [15/16] 0.0, 128
        %296 = vxpose.xlu0.b32.end [16/16] 0.0, 128
        %v297 = vpop.trf.xlu0
        %v298 = vpop.trf.xlu0
        %v299 = vpop.trf.xlu0
        %v300 = vpop.trf.xlu0
        %v301 = vpop.trf.xlu0
        %v302 = vpop.trf.xlu0
        %v303 = vpop.trf.xlu0
        %v304 = vpop.trf.xlu0
        %v305 = vpop.trf.xlu0
        %v306 = vpop.trf.xlu0
        %v307 = vpop.trf.xlu0
        %v308 = vpop.trf.xlu0
        %v309 = vpop.trf.xlu0
        %v310 = vpop.trf.xlu0
        %v311 = vpop.trf.xlu0
        %v312 = vpop.trf.xlu0
        %vm313 = vcmask 261120
        %v315 = vsel %vm313, %v297, 0
        %v318 = vsel %vm313, %v298, 0
        %v321 = vsel %vm313, %v299, 0
        %v324 = vsel %vm313, %v300, 0
        %v327 = vsel %vm313, %v301, 0
        %v330 = vsel %vm313, %v302, 0
        %v333 = vsel %vm313, %v303, 0
        %v336 = vsel %vm313, %v304, 0
        %v339 = vsel %vm313, %v305, 0
        %v342 = vsel %vm313, %v306, 0
        %v345 = vsel %vm313, %v307, 0
        %v348 = vsel %vm313, %v308, 0
        %v351 = vsel %vm313, %v309, 0
        %v354 = vsel %vm313, %v310, 0
        %v357 = vsel %vm313, %v311, 0
        %v360 = vsel %vm313, %v312, 0
        %362 = vmatprep.subr.mxu0 0.0
        %363 = vmatpush1.msra.mxu0 %v261
        %364 = vmatprep.subr.mxu0 0.0
        %365 = vmatpush1.msra.mxu0 %v262
        %366 = vmatprep.subr.mxu0 0.0
        %367 = vmatpush1.msra.mxu0 %v263
        %368 = vmatprep.subr.mxu0 0.0
        %369 = vmatpush1.msra.mxu0 %v264
        %370 = vmatprep.subr.mxu0 0.0
        %371 = vmatpush1.msra.mxu0 0.0
        %372 = vmatprep.subr.mxu0 0.0
        %373 = vmatpush1.msra.mxu0 0.0
        %374 = vmatprep.subr.mxu0 0.0
        %375 = vmatpush1.msra.mxu0 0.0
        %376 = vmatprep.subr.mxu0 0.0
        %377 = vmatpush1.msra.mxu0 0.0
        %378 = vmatprep.subr.mxu0 0.0
        %379 = vmatpush1.msra.mxu0 0.0
        %380 = vmatprep.subr.mxu0 0.0
        %381 = vmatpush1.msra.mxu0 0.0
        %382 = vmatprep.subr.mxu0 0.0
        %383 = vmatpush1.msra.mxu0 0.0
        %384 = vmatprep.subr.mxu0 0.0
        %385 = vmatpush1.msra.mxu0 0.0
        %386 = vmatprep.subr.mxu0 0.0
        %387 = vmatpush1.msra.mxu0 0.0
        %388 = vmatprep.subr.mxu0 0.0
        %389 = vmatpush1.msra.mxu0 0.0
        %390 = vmatprep.subr.mxu0 0.0
        %391 = vmatpush1.msra.mxu0 0.0
        %392 = vmatprep.subr.mxu0 0.0
        %393 = vmatpush1.msra.mxu0 0.0
        %394 = vmatprep.subr.mxu0 0.0
        %395 = vmatpush1.msra.mxu0 0.0
        %396 = vmatprep.subr.mxu0 0.0
        %397 = vmatpush1.msra.mxu0 0.0
        %398 = vmatprep.subr.mxu0 0.0
        %399 = vmatpush1.msra.mxu0 0.0
        %400 = vmatprep.subr.mxu0 0.0
        %401 = vmatpush1.msra.mxu0 0.0
        %402 = vmatprep.subr.mxu0 0.0
        %403 = vmatpush1.msra.mxu0 0.0
        %404 = vmatprep.subr.mxu0 0.0
        %405 = vmatpush1.msra.mxu0 0.0
        %406 = vmatprep.subr.mxu0 0.0
        %407 = vmatpush1.msra.mxu0 0.0
        %408 = vmatprep.subr.mxu0 0.0
        %409 = vmatpush1.msra.mxu0 0.0
        %410 = vmatprep.subr.mxu0 0.0
        %411 = vmatpush1.msra.mxu0 0.0
        %412 = vmatprep.subr.mxu0 0.0
        %413 = vmatpush1.msra.mxu0 0.0
        %414 = vmatprep.subr.mxu0 0.0
        %415 = vmatpush1.msra.mxu0 0.0
        %416 = vmatprep.subr.mxu0 0.0
        %417 = vmatpush1.msra.mxu0 0.0
        %418 = vmatprep.subr.mxu0 0.0
        %419 = vmatpush1.msra.mxu0 0.0
        %420 = vmatprep.subr.mxu0 0.0
        %421 = vmatpush1.msra.mxu0 0.0
        %422 = vmatprep.subr.mxu0 0.0
        %423 = vmatpush1.msra.mxu0 0.0
        %424 = vmatprep.subr.mxu0 0.0
        %425 = vmatpush1.msra.mxu0 0.0
        %426 = vmatprep.mubr.f32.mxu0 0.0
        %427 = vmatmul.mubr.f32.gmra.mrb[0].mxu0 %v315
        %v428 = vpop.f32.mrb[0].mxu0
        %v429 = vadd.f32 0.0, %v428
        %v430 = vpop.f32.mrb[0].mxu0
        %431 = vmatprep.mubr.f32.mxu0 0.0
        %432 = vmatmul.mubr.f32.gmra.mrb[0].mxu0 %v318
        %v433 = vpop.f32.mrb[0].mxu0
        %v434 = vadd.f32 0.0, %v433
        %v435 = vpop.f32.mrb[0].mxu0
        %436 = vmatprep.mubr.f32.mxu0 0.0
        %437 = vmatmul.mubr.f32.gmra.mrb[0].mxu0 %v321
        %v438 = vpop.f32.mrb[0].mxu0
        %v439 = vadd.f32 0.0, %v438
        %v440 = vpop.f32.mrb[0].mxu0
        %441 = vmatprep.mubr.f32.mxu0 0.0
        %442 = vmatmul.mubr.f32.gmra.mrb[0].mxu0 %v324
        %v443 = vpop.f32.mrb[0].mxu0
        %v444 = vadd.f32 0.0, %v443
        %v445 = vpop.f32.mrb[0].mxu0
        %446 = vmatprep.mubr.f32.mxu0 0.0
        %447 = vmatmul.mubr.f32.gmra.mrb[0].mxu0 %v327
        %v448 = vpop.f32.mrb[0].mxu0
        %v449 = vadd.f32 0.0, %v448
        %v450 = vpop.f32.mrb[0].mxu0
        %451 = vmatprep.mubr.f32.mxu0 0.0
        %452 = vmatmul.mubr.f32.gmra.mrb[0].mxu0 %v330
        %v453 = vpop.f32.mrb[0].mxu0
        %v454 = vadd.f32 0.0, %v453
        %v455 = vpop.f32.mrb[0].mxu0
        %456 = vmatprep.mubr.f32.mxu0 0.0
        %457 = vmatmul.mubr.f32.gmra.mrb[0].mxu0 %v333
        %v458 = vpop.f32.mrb[0].mxu0
        %v459 = vadd.f32 0.0, %v458
        %v460 = vpop.f32.mrb[0].mxu0
        %461 = vmatprep.mubr.f32.mxu0 0.0
        %462 = vmatmul.mubr.f32.gmra.mrb[0].mxu0 %v336
        %v463 = vpop.f32.mrb[0].mxu0
        %v464 = vadd.f32 0.0, %v463
        %v465 = vpop.f32.mrb[0].mxu0
        %466 = vmatprep.mubr.f32.mxu0 0.0
        %467 = vmatmul.mubr.f32.gmra.mrb[0].mxu0 %v339
        %v468 = vpop.f32.mrb[0].mxu0
        %v469 = vadd.f32 0.0, %v468
        %v470 = vpop.f32.mrb[0].mxu0
        %471 = vmatprep.mubr.f32.mxu0 0.0
        %472 = vmatmul.mubr.f32.gmra.mrb[0].mxu0 %v342
        %v473 = vpop.f32.mrb[0].mxu0
        %v474 = vadd.f32 0.0, %v473
        %v475 = vpop.f32.mrb[0].mxu0
        %476 = vmatprep.mubr.f32.mxu0 0.0
        %477 = vmatmul.mubr.f32.gmra.mrb[0].mxu0 %v345
        %v478 = vpop.f32.mrb[0].mxu0
        %v479 = vadd.f32 0.0, %v478
        %v480 = vpop.f32.mrb[0].mxu0
        %481 = vmatprep.mubr.f32.mxu0 0.0
        %482 = vmatmul.mubr.f32.gmra.mrb[0].mxu0 %v348
        %v483 = vpop.f32.mrb[0].mxu0
        %v484 = vadd.f32 0.0, %v483
        %v485 = vpop.f32.mrb[0].mxu0
        %486 = vmatprep.mubr.f32.mxu0 0.0
        %487 = vmatmul.mubr.f32.gmra.mrb[0].mxu0 %v351
        %v488 = vpop.f32.mrb[0].mxu0
        %v489 = vadd.f32 0.0, %v488
        %v490 = vpop.f32.mrb[0].mxu0
        %491 = vmatprep.mubr.f32.mxu0 0.0
        %492 = vmatmul.mubr.f32.gmra.mrb[0].mxu0 %v354
        %v493 = vpop.f32.mrb[0].mxu0
        %v494 = vadd.f32 0.0, %v493
        %v495 = vpop.f32.mrb[0].mxu0
        %496 = vmatprep.mubr.f32.mxu0 0.0
        %497 = vmatmul.mubr.f32.gmra.mrb[0].mxu0 %v357
        %v498 = vpop.f32.mrb[0].mxu0
        %v499 = vadd.f32 0.0, %v498
        %v500 = vpop.f32.mrb[0].mxu0
        %501 = vmatprep.mubr.f32.mxu0 0.0
        %502 = vmatmul.mubr.f32.gmra.mrb[0].mxu0 %v360
        %v503 = vpop.f32.mrb[0].mxu0
        %v504 = vadd.f32 0.0, %v503
        %v505 = vpop.f32.mrb[0].mxu0
        %506 = vdwg.mxu0
        %v507 = vadd.f32 %v265, %v429
        %v508 = vadd.f32 %v266, %v434
        %v509 = vadd.f32 %v267, %v439
        %v510 = vadd.f32 %v268, %v444
        %v511 = vadd.f32 %v269, %v449
        %v512 = vadd.f32 %v270, %v454
        %v513 = vadd.f32 %v271, %v459
        %v514 = vadd.f32 %v272, %v464
        %v515 = vadd.f32 %v273, %v469
        %v516 = vadd.f32 %v274, %v474
        %v517 = vadd.f32 %v275, %v479
        %v518 = vadd.f32 %v276, %v484
        %v519 = vadd.f32 %v277, %v489
        %v520 = vadd.f32 %v278, %v494
        %v521 = vadd.f32 %v279, %v499
        %v522 = vadd.f32 %v280, %v504
        %523 = vst [vmem:[#allocation2] sm:$0xff] %v507
        %524 = vst [vmem:[#allocation2 + $0x8] sm:$0xff] %v508
        %525 = vst [vmem:[#allocation2 + $0x10] sm:$0xff] %v509
        %526 = vst [vmem:[#allocation2 + $0x18] sm:$0xff] %v510
        %527 = vst [vmem:[#allocation2 + $0x20] sm:$0xff] %v511
        %528 = vst [vmem:[#allocation2 + $0x28] sm:$0xff] %v512
        %529 = vst [vmem:[#allocation2 + $0x30] sm:$0xff] %v513
        %530 = vst [vmem:[#allocation2 + $0x38] sm:$0xff] %v514
        %531 = vst [vmem:[#allocation2 + $0x40] sm:$0xff] %v515
        %532 = vst [vmem:[#allocation2 + $0x48] sm:$0xff] %v516
        %533 = vst [vmem:[#allocation2 + $0x50] sm:$0xff] %v517
        %534 = vst [vmem:[#allocation2 + $0x58] sm:$0xff] %v518
        %535 = vst [vmem:[#allocation2 + $0x60] sm:$0xff] %v519
        %536 = vst [vmem:[#allocation2 + $0x68] sm:$0xff] %v520
        %537 = vst [vmem:[#allocation2 + $0x70] sm:$0xff] %v521
        %538 = vst [vmem:[#allocation2 + $0x78] sm:$0xff] %v522
        %v539 = vld [vmem:[#allocation3] sm:$0x1]
        %v540 = vadd.f32 %v257, %v258
        %v541 = vadd.f32 %v540, %v259
        %v542 = vadd.f32 %v541, %v260
        %v543 = vrot.slane %v542, 4
        %v544 = vadd.f32 %v542, %v543
        %v545 = vrot.slane %v544, 2
        %v546 = vadd.f32 %v544, %v545
        %v547 = vrot.slane %v546, 1
        %v548 = vadd.f32 %v546, %v547
        %v549 = vadd.f32 %v539, %v548
        %550 = vst [vmem:[#allocation3] sm:$0x1] %v549
        %v551 = vld [vmem:[#allocation4] sm:$0x1]
        %v552 = vmul.f32 %v257, %v257
        %v553 = vmul.f32 %v258, %v258
        %v554 = vmul.f32 %v259, %v259
        %v555 = vmul.f32 %v260, %v260
        %v556 = vadd.f32 %v552, %v553
        %v557 = vadd.f32 %v556, %v554
        %v558 = vadd.f32 %v557, %v555
        %v559 = vrot.slane %v558, 4
        %v560 = vadd.f32 %v558, %v559
        %v561 = vrot.slane %v560, 2
        %v562 = vadd.f32 %v560, %v561
        %v563 = vrot.slane %v562, 1
        %v564 = vadd.f32 %v562, %v563
        %v565 = vadd.f32 %v551, %v564
        %566 = vst [vmem:[#allocation4] sm:$0x1] %v565
        %v567 = vld [vmem:[#allocation5] sm:$0x1]
        %v568 = vadd.f32 %v261, %v262
        %v569 = vadd.f32 %v568, %v263
        %v570 = vadd.f32 %v569, %v264
        %v571 = vrot.slane %v570, 4
        %v572 = vadd.f32 %v570, %v571
        %v573 = vrot.slane %v572, 2
        %v574 = vadd.f32 %v572, %v573
        %v575 = vrot.slane %v574, 1
        %v576 = vadd.f32 %v574, %v575
        %v577 = vadd.f32 %v567, %v576
        %578 = vst [vmem:[#allocation5] sm:$0x1] %v577
        %v579 = vld [vmem:[#allocation6] sm:$0x1]
        %v580 = vmul.f32 %v261, %v261
        %v581 = vmul.f32 %v262, %v262
        %v582 = vmul.f32 %v263, %v263
        %v583 = vmul.f32 %v264, %v264
        %v584 = vadd.f32 %v580, %v581
        %v585 = vadd.f32 %v584, %v582
        %v586 = vadd.f32 %v585, %v583
        %v587 = vrot.slane %v586, 4
        %v588 = vadd.f32 %v586, %v587
        %v589 = vrot.slane %v588, 2
        %v590 = vadd.f32 %v588, %v589
        %v591 = vrot.slane %v590, 1
        %v592 = vadd.f32 %v590, %v591
        %v593 = vadd.f32 %v579, %v592
        %594 = vst [vmem:[#allocation6] sm:$0x1] %v593
        %p595 = scmp.eq.s32.totalorder %s29, 1
        // Predicated region
        $region41: #{tpu_custom_call.1} parent=27 // pred_check
          %p596 = pneg %p595
        $region42: #{tpu_custom_call.1} parent=27 // pred_check_branch
          %598 = sbr.rel (%p596) target = $region44
        $region43: #{tpu_custom_call.1} parent=27 // pred_region
          %v599 = vld [vmem:[#allocation3] sm:$0x1]
          %v600 = vmul.f32 %v599, 0.015625
          %v601 = vld [vmem:[#allocation4] sm:$0x1]
          %v602 = vmul.f32 %v601, 0.015625
          %v603 = vmul.f32 %v600, %v600
          %v604 = vsub.f32 %v602, %v603
          %v605 = vadd.f32 %v604, 1e-05
          %v606 = vrsqrt.pop %v605
          %v607 = vld [vmem:[#allocation5] sm:$0x1]
          %v608 = vmul.f32 %v607, 0.015625
          %v609 = vld [vmem:[#allocation6] sm:$0x1]
          %v610 = vmul.f32 %v609, 0.015625
          %v611 = vmul.f32 %v608, %v608
          %v612 = vsub.f32 %v610, %v611
          %v613 = vadd.f32 %v612, 1e-05
          %v614 = vrsqrt.pop %v613
          %615 = vxpose.xlu0.b32.start [1/16] %v600, 128
          %616 = vxpose.xlu0.b32.cont [2/16] 0.0, 128
          %617 = vxpose.xlu0.b32.cont [3/16] 0.0, 128
          %618 = vxpose.xlu0.b32.cont [4/16] 0.0, 128
          %619 = vxpose.xlu0.b32.cont [5/16] 0.0, 128
          %620 = vxpose.xlu0.b32.cont [6/16] 0.0, 128
          %621 = vxpose.xlu0.b32.cont [7/16] 0.0, 128
          %622 = vxpose.xlu0.b32.cont [8/16] 0.0, 128
          %623 = vxpose.xlu0.b32.cont [9/16] 0.0, 128
          %624 = vxpose.xlu0.b32.cont [10/16] 0.0, 128
          %625 = vxpose.xlu0.b32.cont [11/16] 0.0, 128
          %626 = vxpose.xlu0.b32.cont [12/16] 0.0, 128
          %627 = vxpose.xlu0.b32.cont [13/16] 0.0, 128
          %628 = vxpose.xlu0.b32.cont [14/16] 0.0, 128
          %629 = vxpose.xlu0.b32.cont [15/16] 0.0, 128
          %630 = vxpose.xlu0.b32.end [16/16] 0.0, 128
          %v631 = vpop.trf.xlu0
          %v632 = vpop.trf.xlu0
          %v633 = vpop.trf.xlu0
          %v634 = vpop.trf.xlu0
          %v635 = vpop.trf.xlu0
          %v636 = vpop.trf.xlu0
          %v637 = vpop.trf.xlu0
          %v638 = vpop.trf.xlu0
          %v639 = vpop.trf.xlu0
          %v640 = vpop.trf.xlu0
          %v641 = vpop.trf.xlu0
          %v642 = vpop.trf.xlu0
          %v643 = vpop.trf.xlu0
          %v644 = vpop.trf.xlu0
          %v645 = vpop.trf.xlu0
          %v646 = vpop.trf.xlu0
          %vm647 = vcmask 7168
          %v649 = vsel %vm647, %v631, 0
          %v652 = vsel %vm647, %v632, 0
          %v655 = vsel %vm647, %v633, 0
          %v658 = vsel %vm647, %v634, 0
          %v661 = vsel %vm647, %v635, 0
          %v664 = vsel %vm647, %v636, 0
          %v667 = vsel %vm647, %v637, 0
          %v670 = vsel %vm647, %v638, 0
          %v673 = vsel %vm647, %v639, 0
          %v676 = vsel %vm647, %v640, 0
          %v679 = vsel %vm647, %v641, 0
          %v682 = vsel %vm647, %v642, 0
          %v685 = vsel %vm647, %v643, 0
          %v688 = vsel %vm647, %v644, 0
          %v691 = vsel %vm647, %v645, 0
          %v694 = vsel %vm647, %v646, 0
          %vm696 = vcmask 1040384
          %v698 = vsel %vm696, %v608, 0
          %700 = vmatprep.subr.mxu0 0.0
          %701 = vmatpush1.msra.mxu0 %v698
          %702 = vmatprep.subr.mxu0 0.0
          %703 = vmatpush1.msra.mxu0 0.0
          %704 = vmatprep.subr.mxu0 0.0
          %705 = vmatpush1.msra.mxu0 0.0
          %706 = vmatprep.subr.mxu0 0.0
          %707 = vmatpush1.msra.mxu0 0.0
          %708 = vmatprep.subr.mxu0 0.0
          %709 = vmatpush1.msra.mxu0 0.0
          %710 = vmatprep.subr.mxu0 0.0
          %711 = vmatpush1.msra.mxu0 0.0
          %712 = vmatprep.subr.mxu0 0.0
          %713 = vmatpush1.msra.mxu0 0.0
          %714 = vmatprep.subr.mxu0 0.0
          %715 = vmatpush1.msra.mxu0 0.0
          %716 = vmatprep.subr.mxu0 0.0
          %717 = vmatpush1.msra.mxu0 0.0
          %718 = vmatprep.subr.mxu0 0.0
          %719 = vmatpush1.msra.mxu0 0.0
          %720 = vmatprep.subr.mxu0 0.0
          %721 = vmatpush1.msra.mxu0 0.0
          %722 = vmatprep.subr.mxu0 0.0
          %723 = vmatpush1.msra.mxu0 0.0
          %724 = vmatprep.subr.mxu0 0.0
          %725 = vmatpush1.msra.mxu0 0.0
          %726 = vmatprep.subr.mxu0 0.0
          %727 = vmatpush1.msra.mxu0 0.0
          %728 = vmatprep.subr.mxu0 0.0
          %729 = vmatpush1.msra.mxu0 0.0
          %730 = vmatprep.subr.mxu0 0.0
          %731 = vmatpush1.msra.mxu0 0.0
          %732 = vmatprep.subr.mxu0 0.0
          %733 = vmatpush1.msra.mxu0 0.0
          %734 = vmatprep.subr.mxu0 0.0
          %735 = vmatpush1.msra.mxu0 0.0
          %736 = vmatprep.subr.mxu0 0.0
          %737 = vmatpush1.msra.mxu0 0.0
          %738 = vmatprep.subr.mxu0 0.0
          %739 = vmatpush1.msra.mxu0 0.0
          %740 = vmatprep.subr.mxu0 0.0
          %741 = vmatpush1.msra.mxu0 0.0
          %742 = vmatprep.subr.mxu0 0.0
          %743 = vmatpush1.msra.mxu0 0.0
          %744 = vmatprep.subr.mxu0 0.0
          %745 = vmatpush1.msra.mxu0 0.0
          %746 = vmatprep.subr.mxu0 0.0
          %747 = vmatpush1.msra.mxu0 0.0
          %748 = vmatprep.subr.mxu0 0.0
          %749 = vmatpush1.msra.mxu0 0.0
          %750 = vmatprep.subr.mxu0 0.0
          %751 = vmatpush1.msra.mxu0 0.0
          %752 = vmatprep.subr.mxu0 0.0
          %753 = vmatpush1.msra.mxu0 0.0
          %754 = vmatprep.subr.mxu0 0.0
          %755 = vmatpush1.msra.mxu0 0.0
          %756 = vmatprep.subr.mxu0 0.0
          %757 = vmatpush1.msra.mxu0 0.0
          %758 = vmatprep.subr.mxu0 0.0
          %759 = vmatpush1.msra.mxu0 0.0
          %760 = vmatprep.subr.mxu0 0.0
          %761 = vmatpush1.msra.mxu0 0.0
          %762 = vmatprep.subr.mxu0 0.0
          %763 = vmatpush1.msra.mxu0 0.0
          %764 = vmatprep.mubr.f32.mxu0 0.0
          %765 = vmatmul.mubr.f32.gmra.mrb[0].mxu0 %v649
          %v766 = vpop.f32.mrb[0].mxu0
          %v767 = vadd.f32 0.0, %v766
          %v768 = vpop.f32.mrb[0].mxu0
          %769 = vmatprep.mubr.f32.mxu0 0.0
          %770 = vmatmul.mubr.f32.gmra.mrb[0].mxu0 %v652
          %v771 = vpop.f32.mrb[0].mxu0
          %v772 = vadd.f32 0.0, %v771
          %v773 = vpop.f32.mrb[0].mxu0
          %774 = vmatprep.mubr.f32.mxu0 0.0
          %775 = vmatmul.mubr.f32.gmra.mrb[0].mxu0 %v655
          %v776 = vpop.f32.mrb[0].mxu0
          %v777 = vadd.f32 0.0, %v776
          %v778 = vpop.f32.mrb[0].mxu0
          %779 = vmatprep.mubr.f32.mxu0 0.0
          %780 = vmatmul.mubr.f32.gmra.mrb[0].mxu0 %v658
          %v781 = vpop.f32.mrb[0].mxu0
          %v782 = vadd.f32 0.0, %v781
          %v783 = vpop.f32.mrb[0].mxu0
          %784 = vmatprep.mubr.f32.mxu0 0.0
          %785 = vmatmul.mubr.f32.gmra.mrb[0].mxu0 %v661
          %v786 = vpop.f32.mrb[0].mxu0
          %v787 = vadd.f32 0.0, %v786
          %v788 = vpop.f32.mrb[0].mxu0
          %789 = vmatprep.mubr.f32.mxu0 0.0
          %790 = vmatmul.mubr.f32.gmra.mrb[0].mxu0 %v664
          %v791 = vpop.f32.mrb[0].mxu0
          %v792 = vadd.f32 0.0, %v791
          %v793 = vpop.f32.mrb[0].mxu0
          %794 = vmatprep.mubr.f32.mxu0 0.0
          %795 = vmatmul.mubr.f32.gmra.mrb[0].mxu0 %v667
          %v796 = vpop.f32.mrb[0].mxu0
          %v797 = vadd.f32 0.0, %v796
          %v798 = vpop.f32.mrb[0].mxu0
          %799 = vmatprep.mubr.f32.mxu0 0.0
          %800 = vmatmul.mubr.f32.gmra.mrb[0].mxu0 %v670
          %v801 = vpop.f32.mrb[0].mxu0
          %v802 = vadd.f32 0.0, %v801
          %v803 = vpop.f32.mrb[0].mxu0
          %804 = vmatprep.mubr.f32.mxu0 0.0
          %805 = vmatmul.mubr.f32.gmra.mrb[0].mxu0 %v673
          %v806 = vpop.f32.mrb[0].mxu0
          %v807 = vadd.f32 0.0, %v806
          %v808 = vpop.f32.mrb[0].mxu0
          %809 = vmatprep.mubr.f32.mxu0 0.0
          %810 = vmatmul.mubr.f32.gmra.mrb[0].mxu0 %v676
          %v811 = vpop.f32.mrb[0].mxu0
          %v812 = vadd.f32 0.0, %v811
          %v813 = vpop.f32.mrb[0].mxu0
          %814 = vmatprep.mubr.f32.mxu0 0.0
          %815 = vmatmul.mubr.f32.gmra.mrb[0].mxu0 %v679
          %v816 = vpop.f32.mrb[0].mxu0
          %v817 = vadd.f32 0.0, %v816
          %v818 = vpop.f32.mrb[0].mxu0
          %819 = vmatprep.mubr.f32.mxu0 0.0
          %820 = vmatmul.mubr.f32.gmra.mrb[0].mxu0 %v682
          %v821 = vpop.f32.mrb[0].mxu0
          %v822 = vadd.f32 0.0, %v821
          %v823 = vpop.f32.mrb[0].mxu0
          %824 = vmatprep.mubr.f32.mxu0 0.0
          %825 = vmatmul.mubr.f32.gmra.mrb[0].mxu0 %v685
          %v826 = vpop.f32.mrb[0].mxu0
          %v827 = vadd.f32 0.0, %v826
          %v828 = vpop.f32.mrb[0].mxu0
          %829 = vmatprep.mubr.f32.mxu0 0.0
          %830 = vmatmul.mubr.f32.gmra.mrb[0].mxu0 %v688
          %v831 = vpop.f32.mrb[0].mxu0
          %v832 = vadd.f32 0.0, %v831
          %v833 = vpop.f32.mrb[0].mxu0
          %834 = vmatprep.mubr.f32.mxu0 0.0
          %835 = vmatmul.mubr.f32.gmra.mrb[0].mxu0 %v691
          %v836 = vpop.f32.mrb[0].mxu0
          %v837 = vadd.f32 0.0, %v836
          %v838 = vpop.f32.mrb[0].mxu0
          %839 = vmatprep.mubr.f32.mxu0 0.0
          %840 = vmatmul.mubr.f32.gmra.mrb[0].mxu0 %v694
          %v841 = vpop.f32.mrb[0].mxu0
          %v842 = vadd.f32 0.0, %v841
          %v843 = vpop.f32.mrb[0].mxu0
          %844 = vdwg.mxu0
          %845 = vxpose.xlu0.b32.start [1/16] %v606, 128
          %846 = vxpose.xlu0.b32.cont [2/16] 0.0, 128
          %847 = vxpose.xlu0.b32.cont [3/16] 0.0, 128
          %848 = vxpose.xlu0.b32.cont [4/16] 0.0, 128
          %849 = vxpose.xlu0.b32.cont [5/16] 0.0, 128
          %850 = vxpose.xlu0.b32.cont [6/16] 0.0, 128
          %851 = vxpose.xlu0.b32.cont [7/16] 0.0, 128
          %852 = vxpose.xlu0.b32.cont [8/16] 0.0, 128
          %853 = vxpose.xlu0.b32.cont [9/16] 0.0, 128
          %854 = vxpose.xlu0.b32.cont [10/16] 0.0, 128
          %855 = vxpose.xlu0.b32.cont [11/16] 0.0, 128
          %856 = vxpose.xlu0.b32.cont [12/16] 0.0, 128
          %857 = vxpose.xlu0.b32.cont [13/16] 0.0, 128
          %858 = vxpose.xlu0.b32.cont [14/16] 0.0, 128
          %859 = vxpose.xlu0.b32.cont [15/16] 0.0, 128
          %860 = vxpose.xlu0.b32.end [16/16] 0.0, 128
          %v861 = vpop.trf.xlu0
          %v862 = vpop.trf.xlu0
          %v863 = vpop.trf.xlu0
          %v864 = vpop.trf.xlu0
          %v865 = vpop.trf.xlu0
          %v866 = vpop.trf.xlu0
          %v867 = vpop.trf.xlu0
          %v868 = vpop.trf.xlu0
          %v869 = vpop.trf.xlu0
          %v870 = vpop.trf.xlu0
          %v871 = vpop.trf.xlu0
          %v872 = vpop.trf.xlu0
          %v873 = vpop.trf.xlu0
          %v874 = vpop.trf.xlu0
          %v875 = vpop.trf.xlu0
          %v876 = vpop.trf.xlu0
          %v878 = vsel %vm647, %v861, 0
          %v881 = vsel %vm647, %v862, 0
          %v884 = vsel %vm647, %v863, 0
          %v887 = vsel %vm647, %v864, 0
          %v890 = vsel %vm647, %v865, 0
          %v893 = vsel %vm647, %v866, 0
          %v896 = vsel %vm647, %v867, 0
          %v899 = vsel %vm647, %v868, 0
          %v902 = vsel %vm647, %v869, 0
          %v905 = vsel %vm647, %v870, 0
          %v908 = vsel %vm647, %v871, 0
          %v911 = vsel %vm647, %v872, 0
          %v914 = vsel %vm647, %v873, 0
          %v917 = vsel %vm647, %v874, 0
          %v920 = vsel %vm647, %v875, 0
          %v923 = vsel %vm647, %v876, 0
          %v926 = vsel %vm696, %v614, 0
          %928 = vmatprep.subr.mxu0 0.0
          %929 = vmatpush1.msra.mxu0 %v926
          %930 = vmatprep.subr.mxu0 0.0
          %931 = vmatpush1.msra.mxu0 0.0
          %932 = vmatprep.subr.mxu0 0.0
          %933 = vmatpush1.msra.mxu0 0.0
          %934 = vmatprep.subr.mxu0 0.0
          %935 = vmatpush1.msra.mxu0 0.0
          %936 = vmatprep.subr.mxu0 0.0
          %937 = vmatpush1.msra.mxu0 0.0
          %938 = vmatprep.subr.mxu0 0.0
          %939 = vmatpush1.msra.mxu0 0.0
          %940 = vmatprep.subr.mxu0 0.0
          %941 = vmatpush1.msra.mxu0 0.0
          %942 = vmatprep.subr.mxu0 0.0
          %943 = vmatpush1.msra.mxu0 0.0
          %944 = vmatprep.subr.mxu0 0.0
          %945 = vmatpush1.msra.mxu0 0.0
          %946 = vmatprep.subr.mxu0 0.0
          %947 = vmatpush1.msra.mxu0 0.0
          %948 = vmatprep.subr.mxu0 0.0
          %949 = vmatpush1.msra.mxu0 0.0
          %950 = vmatprep.subr.mxu0 0.0
          %951 = vmatpush1.msra.mxu0 0.0
          %952 = vmatprep.subr.mxu0 0.0
          %953 = vmatpush1.msra.mxu0 0.0
          %954 = vmatprep.subr.mxu0 0.0
          %955 = vmatpush1.msra.mxu0 0.0
          %956 = vmatprep.subr.mxu0 0.0
          %957 = vmatpush1.msra.mxu0 0.0
          %958 = vmatprep.subr.mxu0 0.0
          %959 = vmatpush1.msra.mxu0 0.0
          %960 = vmatprep.subr.mxu0 0.0
          %961 = vmatpush1.msra.mxu0 0.0
          %962 = vmatprep.subr.mxu0 0.0
          %963 = vmatpush1.msra.mxu0 0.0
          %964 = vmatprep.subr.mxu0 0.0
          %965 = vmatpush1.msra.mxu0 0.0
          %966 = vmatprep.subr.mxu0 0.0
          %967 = vmatpush1.msra.mxu0 0.0
          %968 = vmatprep.subr.mxu0 0.0
          %969 = vmatpush1.msra.mxu0 0.0
          %970 = vmatprep.subr.mxu0 0.0
          %971 = vmatpush1.msra.mxu0 0.0
          %972 = vmatprep.subr.mxu0 0.0
          %973 = vmatpush1.msra.mxu0 0.0
          %974 = vmatprep.subr.mxu0 0.0
          %975 = vmatpush1.msra.mxu0 0.0
          %976 = vmatprep.subr.mxu0 0.0
          %977 = vmatpush1.msra.mxu0 0.0
          %978 = vmatprep.subr.mxu0 0.0
          %979 = vmatpush1.msra.mxu0 0.0
          %980 = vmatprep.subr.mxu0 0.0
          %981 = vmatpush1.msra.mxu0 0.0
          %982 = vmatprep.subr.mxu0 0.0
          %983 = vmatpush1.msra.mxu0 0.0
          %984 = vmatprep.subr.mxu0 0.0
          %985 = vmatpush1.msra.mxu0 0.0
          %986 = vmatprep.subr.mxu0 0.0
          %987 = vmatpush1.msra.mxu0 0.0
          %988 = vmatprep.subr.mxu0 0.0
          %989 = vmatpush1.msra.mxu0 0.0
          %990 = vmatprep.subr.mxu0 0.0
          %991 = vmatpush1.msra.mxu0 0.0
          %992 = vmatprep.mubr.f32.mxu0 0.0
          %993 = vmatmul.mubr.f32.gmra.mrb[0].mxu0 %v878
          %v994 = vpop.f32.mrb[0].mxu0
          %v995 = vadd.f32 0.0, %v994
          %v996 = vpop.f32.mrb[0].mxu0
          %997 = vmatprep.mubr.f32.mxu0 0.0
          %998 = vmatmul.mubr.f32.gmra.mrb[0].mxu0 %v881
          %v999 = vpop.f32.mrb[0].mxu0
          %v1000 = vadd.f32 0.0, %v999
          %v1001 = vpop.f32.mrb[0].mxu0
          %1002 = vmatprep.mubr.f32.mxu0 0.0
          %1003 = vmatmul.mubr.f32.gmra.mrb[0].mxu0 %v884
          %v1004 = vpop.f32.mrb[0].mxu0
          %v1005 = vadd.f32 0.0, %v1004
          %v1006 = vpop.f32.mrb[0].mxu0
          %1007 = vmatprep.mubr.f32.mxu0 0.0
          %1008 = vmatmul.mubr.f32.gmra.mrb[0].mxu0 %v887
          %v1009 = vpop.f32.mrb[0].mxu0
          %v1010 = vadd.f32 0.0, %v1009
          %v1011 = vpop.f32.mrb[0].mxu0
          %1012 = vmatprep.mubr.f32.mxu0 0.0
          %1013 = vmatmul.mubr.f32.gmra.mrb[0].mxu0 %v890
          %v1014 = vpop.f32.mrb[0].mxu0
          %v1015 = vadd.f32 0.0, %v1014
          %v1016 = vpop.f32.mrb[0].mxu0
          %1017 = vmatprep.mubr.f32.mxu0 0.0
          %1018 = vmatmul.mubr.f32.gmra.mrb[0].mxu0 %v893
          %v1019 = vpop.f32.mrb[0].mxu0
          %v1020 = vadd.f32 0.0, %v1019
          %v1021 = vpop.f32.mrb[0].mxu0
          %1022 = vmatprep.mubr.f32.mxu0 0.0
          %1023 = vmatmul.mubr.f32.gmra.mrb[0].mxu0 %v896
          %v1024 = vpop.f32.mrb[0].mxu0
          %v1025 = vadd.f32 0.0, %v1024
          %v1026 = vpop.f32.mrb[0].mxu0
          %1027 = vmatprep.mubr.f32.mxu0 0.0
          %1028 = vmatmul.mubr.f32.gmra.mrb[0].mxu0 %v899
          %v1029 = vpop.f32.mrb[0].mxu0
          %v1030 = vadd.f32 0.0, %v1029
          %v1031 = vpop.f32.mrb[0].mxu0
          %1032 = vmatprep.mubr.f32.mxu0 0.0
          %1033 = vmatmul.mubr.f32.gmra.mrb[0].mxu0 %v902
          %v1034 = vpop.f32.mrb[0].mxu0
          %v1035 = vadd.f32 0.0, %v1034
          %v1036 = vpop.f32.mrb[0].mxu0
          %1037 = vmatprep.mubr.f32.mxu0 0.0
          %1038 = vmatmul.mubr.f32.gmra.mrb[0].mxu0 %v905
          %v1039 = vpop.f32.mrb[0].mxu0
          %v1040 = vadd.f32 0.0, %v1039
          %v1041 = vpop.f32.mrb[0].mxu0
          %1042 = vmatprep.mubr.f32.mxu0 0.0
          %1043 = vmatmul.mubr.f32.gmra.mrb[0].mxu0 %v908
          %v1044 = vpop.f32.mrb[0].mxu0
          %v1045 = vadd.f32 0.0, %v1044
          %v1046 = vpop.f32.mrb[0].mxu0
          %1047 = vmatprep.mubr.f32.mxu0 0.0
          %1048 = vmatmul.mubr.f32.gmra.mrb[0].mxu0 %v911
          %v1049 = vpop.f32.mrb[0].mxu0
          %v1050 = vadd.f32 0.0, %v1049
          %v1051 = vpop.f32.mrb[0].mxu0
          %1052 = vmatprep.mubr.f32.mxu0 0.0
          %1053 = vmatmul.mubr.f32.gmra.mrb[0].mxu0 %v914
          %v1054 = vpop.f32.mrb[0].mxu0
          %v1055 = vadd.f32 0.0, %v1054
          %v1056 = vpop.f32.mrb[0].mxu0
          %1057 = vmatprep.mubr.f32.mxu0 0.0
          %1058 = vmatmul.mubr.f32.gmra.mrb[0].mxu0 %v917
          %v1059 = vpop.f32.mrb[0].mxu0
          %v1060 = vadd.f32 0.0, %v1059
          %v1061 = vpop.f32.mrb[0].mxu0
          %1062 = vmatprep.mubr.f32.mxu0 0.0
          %1063 = vmatmul.mubr.f32.gmra.mrb[0].mxu0 %v920
          %v1064 = vpop.f32.mrb[0].mxu0
          %v1065 = vadd.f32 0.0, %v1064
          %v1066 = vpop.f32.mrb[0].mxu0
          %1067 = vmatprep.mubr.f32.mxu0 0.0
          %1068 = vmatmul.mubr.f32.gmra.mrb[0].mxu0 %v923
          %v1069 = vpop.f32.mrb[0].mxu0
          %v1070 = vadd.f32 0.0, %v1069
          %v1071 = vpop.f32.mrb[0].mxu0
          %1072 = vdwg.mxu0
          %v1073 = vld [vmem:[#allocation2] sm:$0xff]
          %v1074 = vld [vmem:[#allocation2 + $0x8] sm:$0xff]
          %v1075 = vld [vmem:[#allocation2 + $0x10] sm:$0xff]
          %v1076 = vld [vmem:[#allocation2 + $0x18] sm:$0xff]
          %v1077 = vld [vmem:[#allocation2 + $0x20] sm:$0xff]
          %v1078 = vld [vmem:[#allocation2 + $0x28] sm:$0xff]
          %v1079 = vld [vmem:[#allocation2 + $0x30] sm:$0xff]
          %v1080 = vld [vmem:[#allocation2 + $0x38] sm:$0xff]
          %v1081 = vld [vmem:[#allocation2 + $0x40] sm:$0xff]
          %v1082 = vld [vmem:[#allocation2 + $0x48] sm:$0xff]
          %v1083 = vld [vmem:[#allocation2 + $0x50] sm:$0xff]
          %v1084 = vld [vmem:[#allocation2 + $0x58] sm:$0xff]
          %v1085 = vld [vmem:[#allocation2 + $0x60] sm:$0xff]
          %v1086 = vld [vmem:[#allocation2 + $0x68] sm:$0xff]
          %v1087 = vld [vmem:[#allocation2 + $0x70] sm:$0xff]
          %v1088 = vld [vmem:[#allocation2 + $0x78] sm:$0xff]
          %v1089 = vmul.f32 %v767, 64.0
          %v1090 = vmul.f32 %v772, 64.0
          %v1091 = vmul.f32 %v777, 64.0
          %v1092 = vmul.f32 %v782, 64.0
          %v1093 = vmul.f32 %v787, 64.0
          %v1094 = vmul.f32 %v792, 64.0
          %v1095 = vmul.f32 %v797, 64.0
          %v1096 = vmul.f32 %v802, 64.0
          %v1097 = vmul.f32 %v807, 64.0
          %v1098 = vmul.f32 %v812, 64.0
          %v1099 = vmul.f32 %v817, 64.0
          %v1100 = vmul.f32 %v822, 64.0
          %v1101 = vmul.f32 %v827, 64.0
          %v1102 = vmul.f32 %v832, 64.0
          %v1103 = vmul.f32 %v837, 64.0
          %v1104 = vmul.f32 %v842, 64.0
          %v1105 = vsub.f32 %v1073, %v1089
          %v1106 = vsub.f32 %v1074, %v1090
          %v1107 = vsub.f32 %v1075, %v1091
          %v1108 = vsub.f32 %v1076, %v1092
          %v1109 = vsub.f32 %v1077, %v1093
          %v1110 = vsub.f32 %v1078, %v1094
          %v1111 = vsub.f32 %v1079, %v1095
          %v1112 = vsub.f32 %v1080, %v1096
          %v1113 = vsub.f32 %v1081, %v1097
          %v1114 = vsub.f32 %v1082, %v1098
          %v1115 = vsub.f32 %v1083, %v1099
          %v1116 = vsub.f32 %v1084, %v1100
          %v1117 = vsub.f32 %v1085, %v1101
          %v1118 = vsub.f32 %v1086, %v1102
          %v1119 = vsub.f32 %v1087, %v1103
          %v1120 = vsub.f32 %v1088, %v1104
          %v1121 = vmul.f32 %v1105, %v995
          %v1122 = vmul.f32 %v1106, %v1000
          %v1123 = vmul.f32 %v1107, %v1005
          %v1124 = vmul.f32 %v1108, %v1010
          %v1125 = vmul.f32 %v1109, %v1015
          %v1126 = vmul.f32 %v1110, %v1020
          %v1127 = vmul.f32 %v1111, %v1025
          %v1128 = vmul.f32 %v1112, %v1030
          %v1129 = vmul.f32 %v1113, %v1035
          %v1130 = vmul.f32 %v1114, %v1040
          %v1131 = vmul.f32 %v1115, %v1045
          %v1132 = vmul.f32 %v1116, %v1050
          %v1133 = vmul.f32 %v1117, %v1055
          %v1134 = vmul.f32 %v1118, %v1060
          %v1135 = vmul.f32 %v1119, %v1065
          %v1136 = vmul.f32 %v1120, %v1070
          %v1137 = vmul.f32 %v1121, 0.015625
          %v1138 = vmul.f32 %v1122, 0.015625
          %v1139 = vmul.f32 %v1123, 0.015625
          %v1140 = vmul.f32 %v1124, 0.015625
          %v1141 = vmul.f32 %v1125, 0.015625
          %v1142 = vmul.f32 %v1126, 0.015625
          %v1143 = vmul.f32 %v1127, 0.015625
          %v1144 = vmul.f32 %v1128, 0.015625
          %v1145 = vmul.f32 %v1129, 0.015625
          %v1146 = vmul.f32 %v1130, 0.015625
          %v1147 = vmul.f32 %v1131, 0.015625
          %v1148 = vmul.f32 %v1132, 0.015625
          %v1149 = vmul.f32 %v1133, 0.015625
          %v1150 = vmul.f32 %v1134, 0.015625
          %v1151 = vmul.f32 %v1135, 0.015625
          %v1152 = vmul.f32 %v1136, 0.015625
          %v1153 = vmul.f32 %v1137, %v1137
          %v1154 = vmul.f32 %v1138, %v1138
          %v1155 = vmul.f32 %v1139, %v1139
          %v1156 = vmul.f32 %v1140, %v1140
          %v1157 = vmul.f32 %v1141, %v1141
          %v1158 = vmul.f32 %v1142, %v1142
          %v1159 = vmul.f32 %v1143, %v1143
          %v1160 = vmul.f32 %v1144, %v1144
          %v1161 = vmul.f32 %v1145, %v1145
          %v1162 = vmul.f32 %v1146, %v1146
          %v1163 = vmul.f32 %v1147, %v1147
          %v1164 = vmul.f32 %v1148, %v1148
          %v1165 = vmul.f32 %v1149, %v1149
          %v1166 = vmul.f32 %v1150, %v1150
          %v1167 = vmul.f32 %v1151, %v1151
          %v1168 = vmul.f32 %v1152, %v1152
          %v1169 = vadd.f32 %v1153, %v1154
          %v1170 = vadd.f32 %v1169, %v1155
          %v1171 = vadd.f32 %v1170, %v1156
          %v1172 = vadd.f32 %v1171, %v1157
          %v1173 = vadd.f32 %v1172, %v1158
          %v1174 = vadd.f32 %v1173, %v1159
          %v1175 = vadd.f32 %v1174, %v1160
          %v1176 = vadd.f32 %v1175, %v1161
          %v1177 = vadd.f32 %v1176, %v1162
          %v1178 = vadd.f32 %v1177, %v1163
          %v1179 = vadd.f32 %v1178, %v1164
          %v1180 = vadd.f32 %v1179, %v1165
          %v1181 = vadd.f32 %v1180, %v1166
          %v1182 = vadd.f32 %v1181, %v1167
          %v1183 = vadd.f32 %v1182, %v1168
          %1184 = vadd.xlane.f32.xlu0 %v1183
          %v1185 = vpop.xlane.xlu0 %1184
          %v1186 = vrot.slane %v1185, 4
          %v1187 = vadd.f32 %v1185, %v1186
          %v1188 = vrot.slane %v1187, 2
          %v1189 = vadd.f32 %v1187, %v1188
          %v1190 = vrot.slane %v1189, 1
          %v1191 = vadd.f32 %v1189, %v1190
          %s1192 = vtos %v1191
          %v1193 = vlaneseq
          %v1194 = vand.u32 %v1193, 127
          %p1195 = scmp.eq.s32.totalorder %s27, %s28
          // Predicated region
          $region45: #{tpu_custom_call.1} parent=43 // pred_check
            %p1196 = pneg %p1195
          $region46: #{tpu_custom_call.1} parent=43 // pred_check_branch
            %1198 = sbr.rel (%p1196) target = $region48
          $region47: #{tpu_custom_call.1} parent=43 // pred_region
            %v1199 = vlaneseq
            %v1200 = vshrl.u32 %v1199, 7
            %v1201 = vadd.s32 %v1200, 8
            %v1202 = vadd.s32 %v1200, 16
            %v1203 = vadd.s32 %v1200, 24
            %v1204 = vadd.s32 %v1200, 32
            %v1205 = vadd.s32 %v1200, 40
            %v1206 = vadd.s32 %v1200, 48
            %v1207 = vadd.s32 %v1200, 56
            %v1208 = vadd.s32 %v1200, 64
            %v1209 = vadd.s32 %v1200, 72
            %v1210 = vadd.s32 %v1200, 80
            %v1211 = vadd.s32 %v1200, 88
            %v1212 = vadd.s32 %v1200, 96
            %v1213 = vadd.s32 %v1200, 104
            %v1214 = vadd.s32 %v1200, 112
            %v1215 = vadd.s32 %v1200, 120
            %vm1216 = vcmp.eq.s32.totalorder %v1200, %v1194
            %vm1217 = vcmp.eq.s32.totalorder %v1201, %v1194
            %vm1218 = vcmp.eq.s32.totalorder %v1202, %v1194
            %vm1219 = vcmp.eq.s32.totalorder %v1203, %v1194
            %vm1220 = vcmp.eq.s32.totalorder %v1204, %v1194
            %vm1221 = vcmp.eq.s32.totalorder %v1205, %v1194
            %vm1222 = vcmp.eq.s32.totalorder %v1206, %v1194
            %vm1223 = vcmp.eq.s32.totalorder %v1207, %v1194
            %vm1224 = vcmp.eq.s32.totalorder %v1208, %v1194
            %vm1225 = vcmp.eq.s32.totalorder %v1209, %v1194
            %vm1226 = vcmp.eq.s32.totalorder %v1210, %v1194
            %vm1227 = vcmp.eq.s32.totalorder %v1211, %v1194
            %vm1228 = vcmp.eq.s32.totalorder %v1212, %v1194
            %vm1229 = vcmp.eq.s32.totalorder %v1213, %v1194
            %vm1230 = vcmp.eq.s32.totalorder %v1214, %v1194
            %vm1231 = vcmp.eq.s32.totalorder %v1215, %v1194
            %s1232 = smul.u32 %s28, 128
            %v1233 = vstv %s1232
            %v1234 = vadd.s32 %v1194, %v1233
            %vm1235 = vcmp.lt.s32.totalorder %v1234, 192
            %vm1236 = vmand %vm1216, %vm1235
            %vm1237 = vmand %vm1217, %vm1235
            %vm1238 = vmand %vm1218, %vm1235
            %vm1239 = vmand %vm1219, %vm1235
            %vm1240 = vmand %vm1220, %vm1235
            %vm1241 = vmand %vm1221, %vm1235
            %vm1242 = vmand %vm1222, %vm1235
            %vm1243 = vmand %vm1223, %vm1235
            %vm1244 = vmand %vm1224, %vm1235
            %vm1245 = vmand %vm1225, %vm1235
            %vm1246 = vmand %vm1226, %vm1235
            %vm1247 = vmand %vm1227, %vm1235
            %vm1248 = vmand %vm1228, %vm1235
            %vm1249 = vmand %vm1229, %vm1235
            %vm1250 = vmand %vm1230, %vm1235
            %vm1251 = vmand %vm1231, %vm1235
            %v1252 = vsub.f32 %v1137, 1.0
            %v1253 = vsub.f32 %v1138, 1.0
            %v1254 = vsub.f32 %v1139, 1.0
            %v1255 = vsub.f32 %v1140, 1.0
            %v1256 = vsub.f32 %v1141, 1.0
            %v1257 = vsub.f32 %v1142, 1.0
            %v1258 = vsub.f32 %v1143, 1.0
            %v1259 = vsub.f32 %v1144, 1.0
            %v1260 = vsub.f32 %v1145, 1.0
            %v1261 = vsub.f32 %v1146, 1.0
            %v1262 = vsub.f32 %v1147, 1.0
            %v1263 = vsub.f32 %v1148, 1.0
            %v1264 = vsub.f32 %v1149, 1.0
            %v1265 = vsub.f32 %v1150, 1.0
            %v1266 = vsub.f32 %v1151, 1.0
            %v1267 = vsub.f32 %v1152, 1.0
            %v1268 = vmul.f32 %v1252, %v1252
            %v1269 = vmul.f32 %v1253, %v1253
            %v1270 = vmul.f32 %v1254, %v1254
            %v1271 = vmul.f32 %v1255, %v1255
            %v1272 = vmul.f32 %v1256, %v1256
            %v1273 = vmul.f32 %v1257, %v1257
            %v1274 = vmul.f32 %v1258, %v1258
            %v1275 = vmul.f32 %v1259, %v1259
            %v1276 = vmul.f32 %v1260, %v1260
            %v1277 = vmul.f32 %v1261, %v1261
            %v1278 = vmul.f32 %v1262, %v1262
            %v1279 = vmul.f32 %v1263, %v1263
            %v1280 = vmul.f32 %v1264, %v1264
            %v1281 = vmul.f32 %v1265, %v1265
            %v1282 = vmul.f32 %v1266, %v1266
            %v1283 = vmul.f32 %v1267, %v1267
            %v1284 = vsel %vm1236, %v1268, 0.0
            %v1285 = vsel %vm1237, %v1269, 0.0
            %v1286 = vsel %vm1238, %v1270, 0.0
            %v1287 = vsel %vm1239, %v1271, 0.0
            %v1288 = vsel %vm1240, %v1272, 0.0
            %v1289 = vsel %vm1241, %v1273, 0.0
            %v1290 = vsel %vm1242, %v1274, 0.0
            %v1291 = vsel %vm1243, %v1275, 0.0
            %v1292 = vsel %vm1244, %v1276, 0.0
            %v1293 = vsel %vm1245, %v1277, 0.0
            %v1294 = vsel %vm1246, %v1278, 0.0
            %v1295 = vsel %vm1247, %v1279, 0.0
            %v1296 = vsel %vm1248, %v1280, 0.0
            %v1297 = vsel %vm1249, %v1281, 0.0
            %v1298 = vsel %vm1250, %v1282, 0.0
            %v1299 = vsel %vm1251, %v1283, 0.0
            %v1300 = vadd.f32 %v1284, %v1285
            %v1301 = vadd.f32 %v1300, %v1286
            %v1302 = vadd.f32 %v1301, %v1287
            %v1303 = vadd.f32 %v1302, %v1288
            %v1304 = vadd.f32 %v1303, %v1289
            %v1305 = vadd.f32 %v1304, %v1290
            %v1306 = vadd.f32 %v1305, %v1291
            %v1307 = vadd.f32 %v1306, %v1292
            %v1308 = vadd.f32 %v1307, %v1293
            %v1309 = vadd.f32 %v1308, %v1294
            %v1310 = vadd.f32 %v1309, %v1295
            %v1311 = vadd.f32 %v1310, %v1296
            %v1312 = vadd.f32 %v1311, %v1297
            %v1313 = vadd.f32 %v1312, %v1298
            %v1314 = vadd.f32 %v1313, %v1299
            %1315 = vadd.xlane.f32.xlu0 %v1314
            %v1316 = vpop.xlane.xlu0 %1315
            %v1317 = vrot.slane %v1316, 4
            %v1318 = vadd.f32 %v1316, %v1317
            %v1319 = vrot.slane %v1318, 2
            %v1320 = vadd.f32 %v1318, %v1319
            %v1321 = vrot.slane %v1320, 1
            %v1322 = vadd.f32 %v1320, %v1321
            %s1323 = vtos %v1322
            %v1324 = vsel %vm1236, %v1153, 0.0
            %v1325 = vsel %vm1237, %v1154, 0.0
            %v1326 = vsel %vm1238, %v1155, 0.0
            %v1327 = vsel %vm1239, %v1156, 0.0
            %v1328 = vsel %vm1240, %v1157, 0.0
            %v1329 = vsel %vm1241, %v1158, 0.0
            %v1330 = vsel %vm1242, %v1159, 0.0
            %v1331 = vsel %vm1243, %v1160, 0.0
            %v1332 = vsel %vm1244, %v1161, 0.0
            %v1333 = vsel %vm1245, %v1162, 0.0
            %v1334 = vsel %vm1246, %v1163, 0.0
            %v1335 = vsel %vm1247, %v1164, 0.0
            %v1336 = vsel %vm1248, %v1165, 0.0
            %v1337 = vsel %vm1249, %v1166, 0.0
            %v1338 = vsel %vm1250, %v1167, 0.0
            %v1339 = vsel %vm1251, %v1168, 0.0
            %v1340 = vadd.f32 %v1324, %v1325
            %v1341 = vadd.f32 %v1340, %v1326
            %v1342 = vadd.f32 %v1341, %v1327
            %v1343 = vadd.f32 %v1342, %v1328
            %v1344 = vadd.f32 %v1343, %v1329
            %v1345 = vadd.f32 %v1344, %v1330
            %v1346 = vadd.f32 %v1345, %v1331
            %v1347 = vadd.f32 %v1346, %v1332
            %v1348 = vadd.f32 %v1347, %v1333
            %v1349 = vadd.f32 %v1348, %v1334
            %v1350 = vadd.f32 %v1349, %v1335
            %v1351 = vadd.f32 %v1350, %v1336
            %v1352 = vadd.f32 %v1351, %v1337
            %v1353 = vadd.f32 %v1352, %v1338
            %v1354 = vadd.f32 %v1353, %v1339
            %1355 = vadd.xlane.f32.xlu0 %v1354
            %v1356 = vpop.xlane.xlu0 %1355
            %v1357 = vrot.slane %v1356, 4
            %v1358 = vadd.f32 %v1356, %v1357
            %v1359 = vrot.slane %v1358, 2
            %v1360 = vadd.f32 %v1358, %v1359
            %v1361 = vrot.slane %v1360, 1
            %v1362 = vadd.f32 %v1360, %v1361
            %s1363 = vtos %v1362
            %s1364 = ssub.f32 %s1192, %s1363
            %vm1365 = vcmp.eq.s32.totalorder %v1194, 0
            %vm1366 = vcmp.eq.s32.totalorder %v1194, 1
            %v1367 = vstv %s1364
            %v1368 = vsel %vm1366, %v1367, 0.0
            %v1369 = vstv %s1323
            %v1370 = vsel %vm1365, %v1369, %v1368
            %1371 = vst [vmem:[%s230] sm:$0xff] %v1370
          $region48: #{tpu_custom_call.1} parent=43 // pred_fallthru
            _
          %p1372 = scmp.ne.s32.totalorder %s27, %s28
          // Predicated region
          $region49: #{tpu_custom_call.1} parent=43 // pred_check
            %p1373 = pneg %p1372
          $region50: #{tpu_custom_call.1} parent=43 // pred_check_branch
            %1375 = sbr.rel (%p1373) target = $region52
          $region51: #{tpu_custom_call.1} parent=43 // pred_region
            %vm1376 = vcmp.eq.s32.totalorder %v1194, 1
            %v1377 = vstv %s1192
            %v1378 = vsel %vm1376, %v1377, 0.0
            %1379 = vst [vmem:[%s230] sm:$0xff] %v1378
          $region52: #{tpu_custom_call.1} parent=43 // pred_fallthru
            _
        $region44: #{tpu_custom_call.1} parent=27 // pred_fallthru
          _
        %s1380 = sand.u32 %s107, 1
        %s1381 = scalar_lea.sflag [#allocation9], %s1380
        %s1382 = sand.u32 %s107, 1
        %s1383 = smul.addr %s1382, 8
        %s1384 = scalar_lea.vmem [#allocation12], %s1383
        // Predicated region
        $region53: #{tpu_custom_call.1} parent=27 // pred_check
          %p1385 = pneg %p117
        $region54: #{tpu_custom_call.1} parent=27 // pred_check_branch
          %1387 = sbr.rel (%p1385) target = $region56
        $region55: #{tpu_custom_call.1} parent=27 // pred_region
          %s1389 = ssub.s32 128, 128
          %1390 = vsyncadd %s1381, %s1389
          %s1391 = smul.addr %s27, 2
          %s1392 = sadd.s32 %s28, %s1391
          %s1393 = smul.addr %s1392, 128
          %s1394 = scalar_lea.hbm %s2, %s1393
          %s1396 = sshll.u32 %s1384, 4
          %s1397 = int_to_ptr.vmem [resolvable:$true] %s1396
          %1399 = dma.vmem_to_hbm [thread:$0]  %s1397, 128, %s1394, %s1381
        $region56: #{tpu_custom_call.1} parent=27 // pred_fallthru
          _
      $region28: #{tpu_custom_call.1} parent=5 // pred_fallthru
        _
      %p1400 = scmp.le.s32.totalorder 2, %s17
      // Predicated region
      $region57: #{tpu_custom_call.1} parent=5 // pred_check
        %p1401 = pneg %p1400
      $region58: #{tpu_custom_call.1} parent=5 // pred_check_branch
        %1403 = sbr.rel (%p1401) target = $region60
      $region59: #{tpu_custom_call.1} parent=5 // pred_region
        %s1404 = ssub.s32 %s17, 2
        // Predicated region
        $region61: #{tpu_custom_call.1} parent=59 // pred_check
          %p1405 = pneg %p123
        $region62: #{tpu_custom_call.1} parent=59 // pred_check_branch
          %1407 = sbr.rel (%p1405) target = $region64
        $region63: #{tpu_custom_call.1} parent=59 // pred_region
          %s1408 = sand.u32 %s108, 1
          %s1409 = scalar_lea.sflag [#allocation9], %s1408
          %s1410 = sand.u32 %s108, 1
          %s1411 = smul.addr %s1410, 8
          %s1412 = scalar_lea.vmem [#allocation12], %s1411
          %1413 = dma.done %s1409, 128
        $region64: #{tpu_custom_call.1} parent=59 // pred_fallthru
          _
      $region60: #{tpu_custom_call.1} parent=5 // pred_fallthru
        _
    $region6: #{tpu_custom_call.1} parent=1 // loop_footer
      %s21 = sadd.s32 1, %s17
    $region7: #{tpu_custom_call.1} parent=1 // loop_footer_branch
      %16 = sbr.rel target = $region3
    $region8: #{tpu_custom_call.1} parent=1 // loop_exit
      _
    %1414 = vsyncpa [#allocation8], 1
    %s1415 = scalar_lea.sflag [#allocation8], 1
    %1416 = vsyncpa %s1415, 1
    %1417 = vsyncpa [#allocation11], 1
    %s1418 = scalar_lea.sflag [#allocation11], 1
    %1419 = vsyncpa %s1418, 1
    %1420 = vsyncpa [#allocation9], 1
    %s1421 = scalar_lea.sflag [#allocation9], 1
    %1422 = vsyncpa %s1421, 1

</llo_original>
